<compile_context>
chip_gen: v6e
topology: v6e:2x2x1
jax: 0.10.0
libtpu: 0.0.40
codegen_flags: <defaults>
</compile_context>

<pallas_src>
import jax
import jax.numpy as jnp
from jax import lax
from jax.experimental import pallas as pl
from jax.experimental.pallas import tpu as pltpu

_LOG_EPS = -23.025850929940457  # log(1e-10)


# ------------------------------------------------------------------- kernel --

def _make_nerf_kernel(K, H, want_out):
    """Fused NeRF coarse pass for one tile of T rays (ray-minor / lane-dense layout).

    inputs : rays (8,T), z (K,T), w1t (H,3), b1 (H,1), w2bd (4K, K*H) bf16, b2bd (4K,1),
             clamp (2,) SMEM scalars [min(z), max(z)]
    outputs: [out (4K,T) optional], weights (K,T) (row K-1 is exactly 0), rgbd (4,T)
    scratch: hid (K*H, T) bf16
    """

    def kernel(rays_ref, z_ref, w1t_ref, b1_ref, w2bd_ref, b2bd_ref, clamp_ref, *refs):
        if want_out:
            out_ref, w_ref, rgbd_ref, hid_ref = refs
        else:
            w_ref, rgbd_ref, hid_ref = refs
            out_ref = None

        # ------------------------- field network: model(pnts * 2) -------------------------
        # points = o + z*d, so the 3->H layer is affine in z:  pre_act = A + z*B
        #   A = W1^T (2 o) + b1 ,  B = W1^T (2 d)
        # contraction dim is only 3 -> exact f32 on the VPU (done once per tile).
        w1t = w1t_ref[...]                                     # (H, 3)
        w1x, w1y, w1z = w1t[:, 0:1], w1t[:, 1:2], w1t[:, 2:3]  # (H, 1) columns (once per tile)
        ox, oy, oz = rays_ref[0:1, :], rays_ref[1:2, :], rays_ref[2:3, :]
        dx, dy, dz = rays_ref[3:4, :], rays_ref[4:5, :], rays_ref[5:6, :]
        A = 2.0 * (w1x * ox + w1y * oy + w1z * oz) + b1_ref[...]   # (H, T)
        B = 2.0 * (w1x * dx + w1y * dy + w1z * dz)                 # (H, T)

        # Hidden activations of all K samples packed along sublanes: hid[k*H:(k+1)*H] = relu(A + z_k*B).
        # bf16 scratch: halves store/VMEM traffic and matches the bf16 MXU matmul that consumes it.
        @pl.loop(0, K)
        def _(k):
            zk = z_ref[pl.ds(k, 1), :]                                   # (1, T)
            hk = jnp.maximum(A + zk * B, 0.0)                            # (H, T), dense slab
            hid_ref[pl.ds(pl.multiple_of(k * H, H), H), :] = hk.astype(jnp.bfloat16)

        # One MXU matmul replaces K tiny matmuls + 4K masked single-sublane stores: the block-structured
        # weight (row c*K+k consumes hidden block k) emits the channel-major (4K, T) layout directly.
        raw = jnp.dot(w2bd_ref[...], hid_ref[...],
                      preferred_element_type=jnp.float32) + b2bd_ref[...]   # (4K, T) f32
        if want_out:
            out_ref[...] = raw.astype(out_ref.dtype)           # single lane-dense slab store

        # ------------------------- MipRayMarcher2 alpha compositing -------------------------
        # TODO(synk): MipRayMarcher2 source is not in the provided module; this follows the canonical
        # EG3D marcher (softplus(density-1) activation, rgb*2-1 at the end).
        z = z_ref[...]                                         # (K, T)
        sig = raw[0:K, :]

        def _next(x):
            # x_next[k] = x[k+1] for k < K-1, x_next[K-1] = x[K-1]  => deltas last row is exactly 0
            return jnp.concatenate([x[1:, :], x[K - 1:K, :]], axis=0)

        deltas = _next(z) - z                                  # (K, T), last row == 0
        s_mid = 0.5 * (sig + _next(sig))

        # softplus(x) = max(x,0) + log(1 + exp(-|x|))
        xa = s_mid - 1.0
        s_act = jnp.maximum(xa, 0.0) + jnp.log(1.0 + jnp.exp(-jnp.abs(xa)))
        dd = s_act * deltas
        alpha = 1.0 - jnp.exp(-dd)                             # row K-1 exactly 0
        # log(1 - alpha + 1e-10) == log(exp(-dd) + 1e-10) ~= max(-dd, log(1e-10))
        logt = jnp.maximum(-dd, jnp.float32(_LOG_EPS))

        # exclusive cumulative transmittance T_excl[j] = exp(sum_{k<j} logt[k]) via an exact-f32
        # log-step (Hillis-Steele) scan along sublanes — no mask matmul / HIGHEST emulation needed.
        c = logt
        d = 1
        while d < K:
            c = c + jnp.concatenate([jnp.zeros_like(c[:d, :]), c[:K - d, :]], axis=0)
            d *= 2
        t_log = jnp.concatenate([jnp.zeros_like(c[:1, :]), c[:K - 1, :]], axis=0)

        w = alpha * jnp.exp(t_log)                             # (K, T); row K-1 is exactly 0
        w_ref[...] = w

        # sum_k w[k]*0.5*(x[k]+x[k+1]) == sum_j 0.5*(w[j]+w[j-1])*x[j]  (w[-1]=w[K-1]=0)
        # -> no r/g/b/z "mid" temporaries are materialized.
        wc = 0.5 * (w + jnp.concatenate([jnp.zeros_like(w[:1, :]), w[:K - 1, :]], axis=0))

        w_tot = jnp.sum(w, axis=0, keepdims=True)              # (1, T)
        cr = jnp.sum(wc * raw[K:2 * K, :], axis=0, keepdims=True)
        cg = jnp.sum(wc * raw[2 * K:3 * K, :], axis=0, keepdims=True)
        cb = jnp.sum(wc * raw[3 * K:4 * K, :], axis=0, keepdims=True)
        dnum = jnp.sum(wc * z, axis=0, keepdims=True)

        depth = dnum * pl.reciprocal(w_tot, approx=True)       # divide -> EUP slot
        depth = jnp.where(jnp.isnan(depth), jnp.float32(jnp.inf), depth)   # nan_to_num(., inf)
        depth = jnp.minimum(jnp.maximum(depth, clamp_ref[0]), clamp_ref[1])

        rgb = jnp.concatenate([cr, cg, cb], axis=0) * 2.0 - 1.0
        rgbd_ref[...] = jnp.concatenate([rgb, depth], axis=0)  # single (4, T) store

    return kernel


# ----------------------------------------------------------------- wrappers --

def _round_up(x, m):
    return ((x + m - 1) // m) * m


def nerf_fused_pallas(rays_t, z_t, params_t, clamp, tile_n, *, want_out=True,
                      out_dtype=jnp.float32):
    """rays_t (8, Np), z_t (K, Np) -> [out2d (4K, Np)], weights (K, Np), rgbd (4, Np)."""
    w1t, b1c, w2bd, b2bd = params_t
    K, Np = z_t.shape
    H = w1t.shape[0]
    assert Np % tile_n == 0
    const2 = lambda i: (0, 0)

    out_shapes = []
    out_specs = []
    if want_out:
        out_shapes.append(jax.ShapeDtypeStruct((4 * K, Np), out_dtype))
        out_specs.append(pl.BlockSpec((4 * K, tile_n), lambda i: (0, i)))
    out_shapes += [jax.ShapeDtypeStruct((K, Np), jnp.float32),      # weights (row K-1 = 0 pad)
                   jax.ShapeDtypeStruct((4, Np), jnp.float32)]      # rgb (3) + depth (1)
    out_specs += [pl.BlockSpec((K, tile_n), lambda i: (0, i)),
                  pl.BlockSpec((4, tile_n), lambda i: (0, i))]

    # rough per-core VMEM requirement (double-buffered blocks + bf16 hidden scratch + spill slack);
    # raise the scoped limit only when large tiles actually need it (v5e default 16 MiB, v7x 64 MiB phys).
    itemsize_out = jnp.dtype(out_dtype).itemsize
    per_ray = (8 + K) * 4 * 2
    per_ray += ((4 * K * itemsize_out if want_out else 0) + (K + 4) * 4) * 2
    per_ray += K * H * 2
    est_bytes = tile_n * per_ray + (4 * K) * (K * H) * 2 * 2 + (6 << 20)
    vmem_limit = None if est_bytes <= (14 << 20) else int(min(est_bytes, 56 << 20))

    kernel = _make_nerf_kernel(K, H, want_out)
    return pl.pallas_call(
        kernel,
        out_shape=tuple(out_shapes),
        grid=(Np // tile_n,),
        in_specs=[
            pl.BlockSpec((8, tile_n), lambda i: (0, i)),
            pl.BlockSpec((K, tile_n), lambda i: (0, i)),
            pl.BlockSpec((H, 3), const2),
            pl.BlockSpec((H, 1), const2),
            pl.BlockSpec((4 * K, K * H), const2),
            pl.BlockSpec((4 * K, 1), const2),
            pl.BlockSpec(memory_space=pltpu.MemorySpace.SMEM),       # clamp scalars
        ],
        out_specs=tuple(out_specs),
        scratch_shapes=[pltpu.VMEM((K * H, tile_n), jnp.bfloat16)],  # packed hidden activations
        compiler_params=pltpu.CompilerParams(
            dimension_semantics=("parallel",),
            vmem_limit_bytes=vmem_limit),
    )(rays_t, z_t, w1t, b1c, w2bd, b2bd, clamp)


def nerf_renderer_forward(rays, params, key, n_coarse=32, lindisp=False, white_bkgd=False,
                          want_weights=True, want_out=True, out_dtype=jnp.float32,
                          tile_n_max=1024):
    """JAX/Pallas equivalent of NeRFRenderer.forward (coarse-only: n_fine = 0).

    rays: (SB, B, 8) [origins(3), dirs(3), near(1), far(1)].
    Returns dict with 'rgb' (SB,-1,3), 'depth' (SB,-1), 'weights' (SB,-1,K-1), 'out' (N,K,4).
    """
    SB, Bp, _ = rays.shape
    rays_flat = rays.reshape(-1, 8).astype(jnp.float32)
    N = rays_flat.shape[0]
    near, far = rays_flat[:, 6:7], rays_flat[:, 7:8]
    K = n_coarse

    # --- sample_coarse (stratified sampling; torch.rand replaced by jax.random) ---
    step = 1.0 / K
    z_steps = jnp.linspace(0.0, 1.0 - step, K, dtype=jnp.float32)[None, :]
    z_steps = jnp.broadcast_to(z_steps, (N, K))
    z_steps = z_steps + jax.random.uniform(key, (N, K), dtype=jnp.float32) * step
    if not lindisp:
        z = near * (1.0 - z_steps) + far * z_steps
    else:
        z = 1.0 / (1.0 / near * (1.0 - z_steps) + 1.0 / far * z_steps)

    # MipRayMarcher2 clamps depth to [min(depths), max(depths)] over the full tensor (SMEM scalars).
    clamp = jnp.stack([jnp.min(z), jnp.max(z)]).astype(jnp.float32)       # (2,)

    # ray-minor (lane-dense) layout; pick the tile so that there are >=2 grid blocks when possible,
    # so both v7x TensorCores get work under dimension_semantics=("parallel",).
    tile_n_max = max(128, (int(tile_n_max) // 128) * 128)
    tile_n = min(tile_n_max, max(128, _round_up(-(-N // 2), 128)))
    Np = _round_up(N, tile_n)
    pad = Np - N
    rays_t = jnp.pad(rays_flat.T, ((0, 0), (0, pad)))                     # (8, Np)
    z_t = jnp.pad(z.T, ((0, 0), (0, pad)))                                # (K, Np)

    # field-net params (synthetic 2-layer MLP 3->H->4 standing in for `model`).
    w1, b1, w2, b2 = params
    H = w1.shape[1]
    w1t = w1.T.astype(jnp.float32)                                        # (H, 3)
    b1c = b1.reshape(-1, 1).astype(jnp.float32)                           # (H, 1)
    w2t = w2.T.astype(jnp.float32)                                        # (4, H)
    # block-structured H->4 weight: row c*K+k reads hidden block k, so the single MXU matmul emits
    # the channel-major (4K, T) raw-output layout directly (contraction dim = K*H, fully used).
    eyeK = jnp.eye(K, dtype=jnp.float32)
    w2bd = (w2t[:, None, None, :] * eyeK[None, :, :, None]).reshape(4 * K, K * H)
    w2bd = w2bd.astype(jnp.bfloat16)                                      # (4K, K*H)
    b2bd = jnp.repeat(b2.reshape(-1), K).reshape(4 * K, 1).astype(jnp.float32)

    res = nerf_fused_pallas(rays_t, z_t, (w1t, b1c, w2bd, b2bd), clamp, tile_n,
                            want_out=want_out, out_dtype=out_dtype)
    if want_out:
        out2d, w_t, rgbd_t = res
    else:
        w_t, rgbd_t = res
        out2d = None

    # --- unpack back to the PyTorch module's shapes ---
    weights = w_t[:K - 1, :N].T                                           # (N, K-1)
    rgb = rgbd_t[0:3, :N].T                                               # (N, 3)
    depth = rgbd_t[3, :N]                                                 # (N,)

    if white_bkgd:
        # matches the PyTorch module: applied after the marcher's rgb*2-1 remap.
        pix_alpha = jnp.sum(weights, axis=1)
        rgb = rgb + 1.0 - pix_alpha[:, None]

    # --- _format_outputs ---
    out_dict = {
        "rgb": rgb.reshape(SB, -1, 3),
        "depth": depth.reshape(SB, -1),
    }
    if want_out:
        # NOTE: this relayout of the dominant (N*K*4) buffer costs an extra HBM round trip in XLA;
        # consumers that can accept the kernel's channel-major (4K, N) layout should keep it raw.
        out_dict["out"] = out2d[:, :N].reshape(4, K, N).transpose(2, 1, 0)  # (N, K, 4)
    if want_weights:
        out_dict["weights"] = weights.reshape(SB, -1, K - 1)
    return out_dict
    # TODO(synk): fine/importance sampling path (n_fine > 0, torch.searchsorted) and the sched/iter
    # buffers are not translated; this is the coarse-only (n_fine = 0) forward.


# --------------------------------------------------------------- pure-JAX ref --

def _reference(rays, params, z):
    w1, b1, w2, b2 = params
    rays_flat = rays.reshape(-1, 8)
    N, K = z.shape
    points = rays_flat[:, None, 0:3] + z[:, :, None] * rays_flat[:, None, 3:6]
    x = points.reshape(-1, 3) * 2.0
    h = jnp.maximum(jnp.dot(x, w1, precision=lax.Precision.HIGHEST) + b1, 0.0)
    out = (jnp.dot(h, w2, precision=lax.Precision.HIGHEST) + b2).reshape(N, K, 4)
    sigma, rgbs = out[..., 0:1], out[..., 1:4]
    zc = z[:, :, None]
    deltas = zc[:, 1:] - zc[:, :-1]
    c_mid = 0.5 * (rgbs[:, :-1] + rgbs[:, 1:])
    s_mid = 0.5 * (sigma[:, :-1] + sigma[:, 1:])
    z_mid = 0.5 * (zc[:, :-1] + zc[:, 1:])
    s_act = jax.nn.softplus(s_mid - 1.0)
    alpha = 1.0 - jnp.exp(-s_act * deltas)
    shifted = jnp.concatenate([jnp.ones_like(alpha[:, :1]), 1.0 - alpha + 1e-10], axis=1)
    weights = alpha * jnp.cumprod(shifted, axis=1)[:, :-1]
    rgb = jnp.sum(weights * c_mid, axis=1)
    w_tot = jnp.sum(weights, axis=1)
    depth = jnp.sum(weights * z_mid, axis=1) / w_tot
    depth = jnp.where(jnp.isnan(depth), jnp.inf, depth)
    depth = jnp.clip(depth, jnp.min(z), jnp.max(z))
    rgb = rgb * 2.0 - 1.0
    return rgb, depth[:, 0], weights[:, :, 0], out


# --------------------------------------------------------------------- main --

if __name__ == "__main__":
    SB, B, K, H = 2, 64, 32, 32     # super-batch, rays/object, n_coarse, MLP hidden

    key = jax.random.PRNGKey(0)
    k_o, k_d, k_w1, k_w2, k_z = jax.random.split(key, 5)

    # deterministic synthetic rays
    origins = jax.random.uniform(k_o, (SB, B, 3), minval=-0.2, maxval=0.2)
    dirs = jax.random.normal(k_d, (SB, B, 3))
    dirs = dirs / jnp.linalg.norm(dirs, axis=-1, keepdims=True)
    near = jnp.full((SB, B, 1), 0.8, jnp.float32)
    far = jnp.full((SB, B, 1), 1.8, jnp.float32)
    rays = jnp.concatenate([origins, dirs, near, far], axis=-1).astype(jnp.float32)

    # deterministic synthetic "NeRF model" parameters (3 -> H -> 4)
    w1 = (jax.random.normal(k_w1, (3, H)) * 0.5).astype(jnp.float32)
    b1 = jnp.zeros((1, H), jnp.float32)
    w2 = (jax.random.normal(k_w2, (H, 4)) * 0.3).astype(jnp.float32)
    b2 = jnp.zeros((1, 4), jnp.float32)
    params = (w1, b1, w2, b2)

    fwd = jax.jit(lambda r, p, k: nerf_renderer_forward(r, p, k, n_coarse=K))
    outputs = fwd(rays, params, k_z)
    outputs = jax.block_until_ready(outputs)

    # want_out=False fast path (skips the dominant raw-output HBM writeback) must agree on rgb/depth
    fwd_lite = jax.jit(lambda r, p, k: nerf_renderer_forward(r, p, k, n_coarse=K, want_out=False))
    outputs_lite = jax.block_until_ready(fwd_lite(rays, params, k_z))
    assert jnp.allclose(outputs_lite["rgb"], outputs["rgb"], atol=1e-5)
    assert jnp.allclose(outputs_lite["depth"], outputs["depth"], atol=1e-5)

    # sanity check against a pure-JAX reference of the same math (same stratified z samples)
    rays_flat = rays.reshape(-1, 8)
    step = 1.0 / K
    z_steps = jnp.linspace(0.0, 1.0 - step, K, dtype=jnp.float32)[None, :]
    z_steps = jnp.broadcast_to(z_steps, (SB * B, K))
    z_steps = z_steps + jax.random.uniform(k_z, (SB * B, K), dtype=jnp.float32) * step
    z_ref = rays_flat[:, 6:7] * (1.0 - z_steps) + rays_flat[:, 7:8] * z_steps
    rgb_r, depth_r, w_r, out_r = _reference(rays, params, z_ref)

    assert jnp.allclose(outputs["rgb"].reshape(-1, 3), rgb_r, atol=5e-2, rtol=5e-2)
    assert jnp.allclose(outputs["depth"].reshape(-1), depth_r, atol=5e-2, rtol=5e-2)
    assert jnp.allclose(outputs["weights"].reshape(-1, K - 1), w_r, atol=5e-2, rtol=5e-2)
    # raw field outputs checked loosely (H->4 layer runs as a bf16 MXU matmul per perf review)
    assert jnp.allclose(outputs["out"], out_r, atol=1.5e-1, rtol=1.5e-1)
    assert jnp.all(jnp.isfinite(outputs["rgb"]))
    assert outputs["rgb"].shape == (SB, B, 3)
    assert outputs["depth"].shape == (SB, B)
    assert outputs["weights"].shape == (SB, B, K - 1)
    assert outputs["out"].shape == (SB * B, K, 4)

    print("KERNEL_OK")
</pallas_src>

<mosaic_0001>
module attributes {stable_mosaic.version = 11 : i64} {
  func.func @kernel(%arg0: i32, %arg1: memref<8x128xf32, #tpu.memory_space<vmem>>, %arg2: memref<32x128xf32, #tpu.memory_space<vmem>>, %arg3: memref<32x3xf32, #tpu.memory_space<vmem>>, %arg4: memref<32x1xf32, #tpu.memory_space<vmem>>, %arg5: memref<128x1024xbf16, #tpu.memory_space<vmem>>, %arg6: memref<128x1xf32, #tpu.memory_space<vmem>>, %arg7: memref<2xf32, #tpu.memory_space<smem>>, %arg8: memref<128x128xf32, #tpu.memory_space<vmem>>, %arg9: memref<32x128xf32, #tpu.memory_space<vmem>>, %arg10: memref<4x128xf32, #tpu.memory_space<vmem>>, %arg11: memref<1024x128xbf16, #tpu.memory_space<vmem>>) attributes {dimension_semantics = [#tpu.dimension_semantics<parallel>], iteration_bounds = array<i64: 1>, scalar_prefetch = 0 : i64, scratch_operands = 1 : i64, tpu.core_type = #tpu.core_type<tc>, window_params = [{transform_indices = @transform_0, window_bounds = array<i64: 8, 128>}, {transform_indices = @transform_1, window_bounds = array<i64: 32, 128>}, {pipeline_mode = #tpu.pipeline_mode<synchronous>, transform_indices = @transform_2, window_bounds = array<i64: 32, 3>}, {pipeline_mode = #tpu.pipeline_mode<synchronous>, transform_indices = @transform_3, window_bounds = array<i64: 32, 1>}, {pipeline_mode = #tpu.pipeline_mode<synchronous>, transform_indices = @transform_4, window_bounds = array<i64: 128, 1024>}, {pipeline_mode = #tpu.pipeline_mode<synchronous>, transform_indices = @transform_5, window_bounds = array<i64: 128, 1>}, {transform_indices = @transform_6, window_bounds = array<i64: 2>}, {transform_indices = @transform_7, window_bounds = array<i64: 128, 128>}, {transform_indices = @transform_8, window_bounds = array<i64: 32, 128>}, {transform_indices = @transform_9, window_bounds = array<i64: 4, 128>}]} {
    %c0 = arith.constant 0 : index
    %c0_0 = arith.constant 0 : index
    %0 = vector.load %arg3[%c0, %c0_0] : memref<32x3xf32, #tpu.memory_space<vmem>>, vector<32x3xf32>
    %1 = vector.extract_strided_slice %0 {offsets = [0, 0], sizes = [32, 1], strides = [1, 1]} : vector<32x3xf32> to vector<32x1xf32>
    %2 = vector.extract_strided_slice %0 {offsets = [0, 1], sizes = [32, 1], strides = [1, 1]} : vector<32x3xf32> to vector<32x1xf32>
    %3 = vector.extract_strided_slice %0 {offsets = [0, 2], sizes = [32, 1], strides = [1, 1]} : vector<32x3xf32> to vector<32x1xf32>
    %c0_1 = arith.constant 0 : index
    %c0_2 = arith.constant 0 : index
    %4 = vector.load %arg1[%c0_1, %c0_2] : memref<8x128xf32, #tpu.memory_space<vmem>>, vector<1x128xf32>
    %c1 = arith.constant 1 : index
    %c0_3 = arith.constant 0 : index
    %5 = vector.load %arg1[%c1, %c0_3] : memref<8x128xf32, #tpu.memory_space<vmem>>, vector<1x128xf32>
    %c2 = arith.constant 2 : index
    %c0_4 = arith.constant 0 : index
    %6 = vector.load %arg1[%c2, %c0_4] : memref<8x128xf32, #tpu.memory_space<vmem>>, vector<1x128xf32>
    %c3 = arith.constant 3 : index
    %c0_5 = arith.constant 0 : index
    %7 = vector.load %arg1[%c3, %c0_5] : memref<8x128xf32, #tpu.memory_space<vmem>>, vector<1x128xf32>
    %c4 = arith.constant 4 : index
    %c0_6 = arith.constant 0 : index
    %8 = vector.load %arg1[%c4, %c0_6] : memref<8x128xf32, #tpu.memory_space<vmem>>, vector<1x128xf32>
    %c5 = arith.constant 5 : index
    %c0_7 = arith.constant 0 : index
    %9 = vector.load %arg1[%c5, %c0_7] : memref<8x128xf32, #tpu.memory_space<vmem>>, vector<1x128xf32>
    %10 = vector.broadcast %1 : vector<32x1xf32> to vector<32x128xf32>
    %11 = vector.broadcast %4 : vector<1x128xf32> to vector<32x128xf32>
    %12 = arith.mulf %10, %11 : vector<32x128xf32>
    %13 = vector.broadcast %2 : vector<32x1xf32> to vector<32x128xf32>
    %14 = vector.broadcast %5 : vector<1x128xf32> to vector<32x128xf32>
    %15 = arith.mulf %13, %14 : vector<32x128xf32>
    %16 = arith.addf %12, %15 : vector<32x128xf32>
    %17 = vector.broadcast %3 : vector<32x1xf32> to vector<32x128xf32>
    %18 = vector.broadcast %6 : vector<1x128xf32> to vector<32x128xf32>
    %19 = arith.mulf %17, %18 : vector<32x128xf32>
    %20 = arith.addf %16, %19 : vector<32x128xf32>
    %cst = arith.constant 2.000000e+00 : f32
    %21 = vector.broadcast %cst : f32 to vector<32x128xf32>
    %22 = arith.mulf %21, %20 : vector<32x128xf32>
    %c0_8 = arith.constant 0 : index
    %c0_9 = arith.constant 0 : index
    %23 = vector.load %arg4[%c0_8, %c0_9] : memref<32x1xf32, #tpu.memory_space<vmem>>, vector<32x1xf32>
    %24 = vector.broadcast %23 : vector<32x1xf32> to vector<32x128xf32>
    %25 = arith.addf %22, %24 : vector<32x128xf32>
    %26 = vector.broadcast %1 : vector<32x1xf32> to vector<32x128xf32>
    %27 = vector.broadcast %7 : vector<1x128xf32> to vector<32x128xf32>
    %28 = arith.mulf %26, %27 : vector<32x128xf32>
    %29 = vector.broadcast %2 : vector<32x1xf32> to vector<32x128xf32>
    %30 = vector.broadcast %8 : vector<1x128xf32> to vector<32x128xf32>
    %31 = arith.mulf %29, %30 : vector<32x128xf32>
    %32 = arith.addf %28, %31 : vector<32x128xf32>
    %33 = vector.broadcast %3 : vector<32x1xf32> to vector<32x128xf32>
    %34 = vector.broadcast %9 : vector<1x128xf32> to vector<32x128xf32>
    %35 = arith.mulf %33, %34 : vector<32x128xf32>
    %36 = arith.addf %32, %35 : vector<32x128xf32>
    %cst_10 = arith.constant 2.000000e+00 : f32
    %37 = vector.broadcast %cst_10 : f32 to vector<32x128xf32>
    %38 = arith.mulf %37, %36 : vector<32x128xf32>
    %c0_i32 = arith.constant 0 : i32
    %c32_i32 = arith.constant 32 : i32
    %39 = arith.addi %c0_i32, %c32_i32 : i32
    %c1_i32 = arith.constant 1 : i32
    scf.for %arg12 = %c0_i32 to %39 step %c1_i32  : i32 {
      %c1_i32_54 = arith.constant 1 : i32
      %148 = arith.muli %arg12, %c1_i32_54 : i32
      %c0_i32_55 = arith.constant 0 : i32
      %149 = arith.addi %c0_i32_55, %148 : i32
      %150 = arith.index_cast %149 : i32 to index
      %c0_56 = arith.constant 0 : index
      %151 = vector.load %arg2[%150, %c0_56] : memref<32x128xf32, #tpu.memory_space<vmem>>, vector<1x128xf32>
      %152 = vector.broadcast %151 : vector<1x128xf32> to vector<32x128xf32>
      %153 = arith.mulf %152, %38 : vector<32x128xf32>
      %154 = arith.addf %25, %153 : vector<32x128xf32>
      %cst_57 = arith.constant 0.000000e+00 : f32
      %155 = vector.broadcast %cst_57 : f32 to vector<32x128xf32>
      %156 = arith.maximumf %154, %155 : vector<32x128xf32>
      %157 = arith.truncf %156 : vector<32x128xf32> to vector<32x128xbf16>
      %c32_i32_58 = arith.constant 32 : i32
      %158 = arith.muli %149, %c32_i32_58 : i32
      %159 = tpu.assume_multiple %158, 32 : i32
      %160 = arith.index_cast %159 : i32 to index
      %c0_59 = arith.constant 0 : index
      %161 = vector.load %arg11[%160, %c0_59] : memref<1024x128xbf16, #tpu.memory_space<vmem>>, vector<32x128xbf16>
      tpu.vector_store %arg11[%160, %c0_59], %157 {strides = array<i32>} : memref<1024x128xbf16, #tpu.memory_space<vmem>>, vector<32x128xbf16>,
    }
    %c32_i32_11 = arith.constant 32 : i32
    %c0_12 = arith.constant 0 : index
    %c0_13 = arith.constant 0 : index
    %40 = vector.load %arg5[%c0_12, %c0_13] : memref<128x1024xbf16, #tpu.memory_space<vmem>>, vector<128x1024xbf16>
    %c0_14 = arith.constant 0 : index
    %c0_15 = arith.constant 0 : index
    %41 = vector.load %arg11[%c0_14, %c0_15] : memref<1024x128xbf16, #tpu.memory_space<vmem>>, vector<1024x128xbf16>
    %cst_16 = arith.constant dense<0.000000e+00> : vector<128x128xf32>
    %42 = tpu.matmul %40, %41, %cst_16 {dimension_numbers = #tpu.dot_dimension_numbers<[1], [0], [0], [1], [0, 0, 1, 1], [], []>} : vector<128x1024xbf16>, vector<1024x128xbf16>, vector<128x128xf32> -> vector<128x128xf32>
    %c0_17 = arith.constant 0 : index
    %c0_18 = arith.constant 0 : index
    %43 = vector.load %arg6[%c0_17, %c0_18] : memref<128x1xf32, #tpu.memory_space<vmem>>, vector<128x1xf32>
    %44 = vector.broadcast %43 : vector<128x1xf32> to vector<128x128xf32>
    %45 = arith.addf %42, %44 : vector<128x128xf32>
    %c0_19 = arith.constant 0 : index
    %c0_20 = arith.constant 0 : index
    %46 = vector.load %arg8[%c0_19, %c0_20] : memref<128x128xf32, #tpu.memory_space<vmem>>, vector<128x128xf32>
    tpu.vector_store %arg8[%c0_19, %c0_20], %45 {strides = array<i32>} : memref<128x128xf32, #tpu.memory_space<vmem>>, vector<128x128xf32>,
    %c0_21 = arith.constant 0 : index
    %c0_22 = arith.constant 0 : index
    %47 = vector.load %arg2[%c0_21, %c0_22] : memref<32x128xf32, #tpu.memory_space<vmem>>, vector<32x128xf32>
    %48 = vector.extract_strided_slice %45 {offsets = [0, 0], sizes = [32, 128], strides = [1, 1]} : vector<128x128xf32> to vector<32x128xf32>
    %49 = vector.extract_strided_slice %47 {offsets = [1, 0], sizes = [31, 128], strides = [1, 1]} : vector<32x128xf32> to vector<31x128xf32>
    %50 = vector.extract_strided_slice %47 {offsets = [31, 0], sizes = [1, 128], strides = [1, 1]} : vector<32x128xf32> to vector<1x128xf32>
    %51 = tpu.concatenate %49, %50 in 0 : vector<31x128xf32>, vector<1x128xf32> -> vector<32x128xf32>
    %52 = arith.subf %51, %47 : vector<32x128xf32>
    %53 = vector.extract_strided_slice %48 {offsets = [1, 0], sizes = [31, 128], strides = [1, 1]} : vector<32x128xf32> to vector<31x128xf32>
    %54 = vector.extract_strided_slice %48 {offsets = [31, 0], sizes = [1, 128], strides = [1, 1]} : vector<32x128xf32> to vector<1x128xf32>
    %55 = tpu.concatenate %53, %54 in 0 : vector<31x128xf32>, vector<1x128xf32> -> vector<32x128xf32>
    %56 = arith.addf %48, %55 : vector<32x128xf32>
    %cst_23 = arith.constant 5.000000e-01 : f32
    %57 = vector.broadcast %cst_23 : f32 to vector<32x128xf32>
    %58 = arith.mulf %57, %56 : vector<32x128xf32>
    %cst_24 = arith.constant 1.000000e+00 : f32
    %59 = vector.broadcast %cst_24 : f32 to vector<32x128xf32>
    %60 = arith.subf %58, %59 : vector<32x128xf32>
    %cst_25 = arith.constant 0.000000e+00 : f32
    %61 = vector.broadcast %cst_25 : f32 to vector<32x128xf32>
    %62 = arith.maximumf %60, %61 : vector<32x128xf32>
    %63 = math.absf %60 : vector<32x128xf32>
    %cst_26 = arith.constant 0.000000e+00 : f32
    %64 = vector.broadcast %cst_26 : f32 to vector<32x128xf32>
    %65 = arith.subf %64, %63 : vector<32x128xf32>
    %66 = math.exp %65 : vector<32x128xf32>
    %cst_27 = arith.constant 1.000000e+00 : f32
    %67 = vector.broadcast %cst_27 : f32 to vector<32x128xf32>
    %68 = arith.addf %67, %66 : vector<32x128xf32>
    %69 = math.log %68 : vector<32x128xf32>
    %70 = arith.addf %62, %69 : vector<32x128xf32>
    %71 = arith.mulf %70, %52 : vector<32x128xf32>
    %cst_28 = arith.constant 0.000000e+00 : f32
    %72 = vector.broadcast %cst_28 : f32 to vector<32x128xf32>
    %73 = arith.subf %72, %71 : vector<32x128xf32>
    %74 = math.exp %73 : vector<32x128xf32>
    %cst_29 = arith.constant 1.000000e+00 : f32
    %75 = vector.broadcast %cst_29 : f32 to vector<32x128xf32>
    %76 = arith.subf %75, %74 : vector<32x128xf32>
    %cst_30 = arith.constant 0.000000e+00 : f32
    %77 = vector.broadcast %cst_30 : f32 to vector<32x128xf32>
    %78 = arith.subf %77, %71 : vector<32x128xf32>
    %cst_31 = arith.constant -23.0258503 : f32
    %79 = vector.broadcast %cst_31 : f32 to vector<32x128xf32>
    %80 = arith.maximumf %78, %79 : vector<32x128xf32>
    %cst_32 = arith.constant 0.000000e+00 : f32
    %81 = vector.broadcast %cst_32 : f32 to vector<1x128xf32>
    %82 = vector.extract_strided_slice %80 {offsets = [0, 0], sizes = [31, 128], strides = [1, 1]} : vector<32x128xf32> to vector<31x128xf32>
    %83 = tpu.concatenate %81, %82 in 0 : vector<1x128xf32>, vector<31x128xf32> -> vector<32x128xf32>
    %84 = arith.addf %80, %83 : vector<32x128xf32>
    %cst_33 = arith.constant 0.000000e+00 : f32
    %85 = vector.broadcast %cst_33 : f32 to vector<2x128xf32>
    %86 = vector.extract_strided_slice %84 {offsets = [0, 0], sizes = [30, 128], strides = [1, 1]} : vector<32x128xf32> to vector<30x128xf32>
    %87 = tpu.concatenate %85, %86 in 0 : vector<2x128xf32>, vector<30x128xf32> -> vector<32x128xf32>
    %88 = arith.addf %84, %87 : vector<32x128xf32>
    %cst_34 = arith.constant 0.000000e+00 : f32
    %89 = vector.broadcast %cst_34 : f32 to vector<4x128xf32>
    %90 = vector.extract_strided_slice %88 {offsets = [0, 0], sizes = [28, 128], strides = [1, 1]} : vector<32x128xf32> to vector<28x128xf32>
    %91 = tpu.concatenate %89, %90 in 0 : vector<4x128xf32>, vector<28x128xf32> -> vector<32x128xf32>
    %92 = arith.addf %88, %91 : vector<32x128xf32>
    %cst_35 = arith.constant 0.000000e+00 : f32
    %93 = vector.broadcast %cst_35 : f32 to vector<8x128xf32>
    %94 = vector.extract_strided_slice %92 {offsets = [0, 0], sizes = [24, 128], strides = [1, 1]} : vector<32x128xf32> to vector<24x128xf32>
    %95 = tpu.concatenate %93, %94 in 0 : vector<8x128xf32>, vector<24x128xf32> -> vector<32x128xf32>
    %96 = arith.addf %92, %95 : vector<32x128xf32>
    %cst_36 = arith.constant 0.000000e+00 : f32
    %97 = vector.broadcast %cst_36 : f32 to vector<16x128xf32>
    %98 = vector.extract_strided_slice %96 {offsets = [0, 0], sizes = [16, 128], strides = [1, 1]} : vector<32x128xf32> to vector<16x128xf32>
    %99 = tpu.concatenate %97, %98 in 0 : vector<16x128xf32>, vector<16x128xf32> -> vector<32x128xf32>
    %100 = arith.addf %96, %99 : vector<32x128xf32>
    %cst_37 = arith.constant 0.000000e+00 : f32
    %101 = vector.broadcast %cst_37 : f32 to vector<1x128xf32>
    %102 = vector.extract_strided_slice %100 {offsets = [0, 0], sizes = [31, 128], strides = [1, 1]} : vector<32x128xf32> to vector<31x128xf32>
    %103 = tpu.concatenate %101, %102 in 0 : vector<1x128xf32>, vector<31x128xf32> -> vector<32x128xf32>
    %104 = math.exp %103 : vector<32x128xf32>
    %105 = arith.mulf %76, %104 : vector<32x128xf32>
    %c0_38 = arith.constant 0 : index
    %c0_39 = arith.constant 0 : index
    %106 = vector.load %arg9[%c0_38, %c0_39] : memref<32x128xf32, #tpu.memory_space<vmem>>, vector<32x128xf32>
    tpu.vector_store %arg9[%c0_38, %c0_39], %105 {strides = array<i32>} : memref<32x128xf32, #tpu.memory_space<vmem>>, vector<32x128xf32>,
    %cst_40 = arith.constant 0.000000e+00 : f32
    %107 = vector.broadcast %cst_40 : f32 to vector<1x128xf32>
    %108 = vector.extract_strided_slice %105 {offsets = [0, 0], sizes = [31, 128], strides = [1, 1]} : vector<32x128xf32> to vector<31x128xf32>
    %109 = tpu.concatenate %107, %108 in 0 : vector<1x128xf32>, vector<31x128xf32> -> vector<32x128xf32>
    %110 = arith.addf %105, %109 : vector<32x128xf32>
    %cst_41 = arith.constant 5.000000e-01 : f32
    %111 = vector.broadcast %cst_41 : f32 to vector<32x128xf32>
    %112 = arith.mulf %111, %110 : vector<32x128xf32>
    %cst_42 = arith.constant dense<0.000000e+00> : vector<128xf32>
    %113 = vector.multi_reduction <add>, %105, %cst_42 [0] : vector<32x128xf32> to vector<128xf32>
    %114 = vector.shape_cast %113 : vector<128xf32> to vector<1x128xf32>
    %115 = vector.extract_strided_slice %45 {offsets = [32, 0], sizes = [32, 128], strides = [1, 1]} : vector<128x128xf32> to vector<32x128xf32>
    %116 = arith.mulf %112, %115 : vector<32x128xf32>
    %cst_43 = arith.constant dense<0.000000e+00> : vector<128xf32>
    %117 = vector.multi_reduction <add>, %116, %cst_43 [0] : vector<32x128xf32> to vector<128xf32>
    %118 = vector.shape_cast %117 : vector<128xf32> to vector<1x128xf32>
    %119 = vector.extract_strided_slice %45 {offsets = [64, 0], sizes = [32, 128], strides = [1, 1]} : vector<128x128xf32> to vector<32x128xf32>
    %120 = arith.mulf %112, %119 : vector<32x128xf32>
    %cst_44 = arith.constant dense<0.000000e+00> : vector<128xf32>
    %121 = vector.multi_reduction <add>, %120, %cst_44 [0] : vector<32x128xf32> to vector<128xf32>
    %122 = vector.shape_cast %121 : vector<128xf32> to vector<1x128xf32>
    %123 = vector.extract_strided_slice %45 {offsets = [96, 0], sizes = [32, 128], strides = [1, 1]} : vector<128x128xf32> to vector<32x128xf32>
    %124 = arith.mulf %112, %123 : vector<32x128xf32>
    %cst_45 = arith.constant dense<0.000000e+00> : vector<128xf32>
    %125 = vector.multi_reduction <add>, %124, %cst_45 [0] : vector<32x128xf32> to vector<128xf32>
    %126 = vector.shape_cast %125 : vector<128xf32> to vector<1x128xf32>
    %127 = arith.mulf %112, %47 : vector<32x128xf32>
    %cst_46 = arith.constant dense<0.000000e+00> : vector<128xf32>
    %128 = vector.multi_reduction <add>, %127, %cst_46 [0] : vector<32x128xf32> to vector<128xf32>
    %129 = vector.shape_cast %128 : vector<128xf32> to vector<1x128xf32>
    %130 = tpu.reciprocal %114 {approx = true} : vector<1x128xf32> -> vector<1x128xf32>
    %131 = arith.mulf %129, %130 : vector<1x128xf32>
    %132 = arith.cmpf one, %131, %131 : vector<1x128xf32>
    %cst_47 = arith.constant 0x7F800000 : f32
    %133 = vector.broadcast %cst_47 : f32 to vector<1x128xf32>
    %134 = arith.select %132, %133, %131 : vector<1x128xi1>, vector<1x128xf32>
    %c0_48 = arith.constant 0 : index
    %135 = memref.load %arg7[%c0_48] : memref<2xf32, #tpu.memory_space<smem>>
    %136 = vector.broadcast %135 : f32 to vector<1x128xf32>
    %137 = arith.maximumf %134, %136 : vector<1x128xf32>
    %c1_49 = arith.constant 1 : index
    %138 = memref.load %arg7[%c1_49] : memref<2xf32, #tpu.memory_space<smem>>
    %139 = vector.broadcast %138 : f32 to vector<1x128xf32>
    %140 = arith.minimumf %137, %139 : vector<1x128xf32>
    %141 = tpu.concatenate %118, %122, %126 in 0 : vector<1x128xf32>, vector<1x128xf32>, vector<1x128xf32> -> vector<3x128xf32>
    %cst_50 = arith.constant 2.000000e+00 : f32
    %142 = vector.broadcast %cst_50 : f32 to vector<3x128xf32>
    %143 = arith.mulf %141, %142 : vector<3x128xf32>
    %cst_51 = arith.constant 1.000000e+00 : f32
    %144 = vector.broadcast %cst_51 : f32 to vector<3x128xf32>
    %145 = arith.subf %143, %144 : vector<3x128xf32>
    %146 = tpu.concatenate %145, %140 in 0 : vector<3x128xf32>, vector<1x128xf32> -> vector<4x128xf32>
    %c0_52 = arith.constant 0 : index
    %c0_53 = arith.constant 0 : index
    %147 = vector.load %arg10[%c0_52, %c0_53] : memref<4x128xf32, #tpu.memory_space<vmem>>, vector<4x128xf32>
    tpu.vector_store %arg10[%c0_52, %c0_53], %146 {strides = array<i32>} : memref<4x128xf32, #tpu.memory_space<vmem>>, vector<4x128xf32>,
    return
  }
  func.func @transform_0(%arg0: i32) -> (i32, i32) {
    %c0_i32 = arith.constant 0 : i32
    %c0_i32_0 = arith.constant 0 : i32
    return %c0_i32, %arg0 : i32, i32
  }
  func.func @transform_1(%arg0: i32) -> (i32, i32) {
    %c0_i32 = arith.constant 0 : i32
    %c0_i32_0 = arith.constant 0 : i32
    return %c0_i32, %arg0 : i32, i32
  }
  func.func @transform_2(%arg0: i32) -> (i32, i32) {
    %c0_i32 = arith.constant 0 : i32
    %c0_i32_0 = arith.constant 0 : i32
    %c0_i32_1 = arith.constant 0 : i32
    return %c0_i32, %c0_i32_0 : i32, i32
  }
  func.func @transform_3(%arg0: i32) -> (i32, i32) {
    %c0_i32 = arith.constant 0 : i32
    %c0_i32_0 = arith.constant 0 : i32
    %c0_i32_1 = arith.constant 0 : i32
    return %c0_i32, %c0_i32_0 : i32, i32
  }
  func.func @transform_4(%arg0: i32) -> (i32, i32) {
    %c0_i32 = arith.constant 0 : i32
    %c0_i32_0 = arith.constant 0 : i32
    %c0_i32_1 = arith.constant 0 : i32
    return %c0_i32, %c0_i32_0 : i32, i32
  }
  func.func @transform_5(%arg0: i32) -> (i32, i32) {
    %c0_i32 = arith.constant 0 : i32
    %c0_i32_0 = arith.constant 0 : i32
    %c0_i32_1 = arith.constant 0 : i32
    return %c0_i32, %c0_i32_0 : i32, i32
  }
  func.func @transform_6(%arg0: i32) -> i32 {
    %c0_i32 = arith.constant 0 : i32
    %c0_i32_0 = arith.constant 0 : i32
    return %c0_i32 : i32
  }
  func.func @transform_7(%arg0: i32) -> (i32, i32) {
    %c0_i32 = arith.constant 0 : i32
    %c0_i32_0 = arith.constant 0 : i32
    return %c0_i32, %arg0 : i32, i32
  }
  func.func @transform_8(%arg0: i32) -> (i32, i32) {
    %c0_i32 = arith.constant 0 : i32
    %c0_i32_0 = arith.constant 0 : i32
    return %c0_i32, %arg0 : i32, i32
  }
  func.func @transform_9(%arg0: i32) -> (i32, i32) {
    %c0_i32 = arith.constant 0 : i32
    %c0_i32_0 = arith.constant 0 : i32
    return %c0_i32, %arg0 : i32, i32
  }
}

</mosaic_0001>

<llo_original>
// kernel: squeeze.5
$region0: #{squeeze.5}
  %s0 = inlined_call_operand.vmem [shape: f32[128], index: 0, kind: input, shape index: {}]
  %s1 = inlined_call_operand.hbm [shape: f32[2,64], index: 1, kind: output, shape index: {}]
  $region1: #{squeeze.5} parent=0
    #allocation0 [shape = 'u8[1024]{0}', space=vmem, size = 0x400, scoped, tag = 'operand span for operand 1']
    #allocation1 [shape = 's32[1]{0}', space=sflag, size = 0x4, scoped, tag = 'scoped memory for squeeze.5']
    #allocation2 [shape = 'u8[4096]{0}', space=vmem, size = 0x1000, scoped, tag = 'scoped mem for output reshape']
    #allocation3 [shape = 'u8[4096]{0}', space=vmem, size = 0x1000, scoped, tag = 'scoped mem for input reshape']
    %2 = vsyncpa [#allocation1], 0
    %s4 = sshll.u32 1, 1
    %s5 = ssub.s32 %s4, 1
    %v6 = vld [vmem:[%s0] sm:%s5]
    %7 = vst [vmem:[#allocation3] sm:%s5] %v6
    %v8 = vld [vmem:[#allocation3] sm:$0x1]
    %vm9 = vcmask 523264
    %10 = vst.msk [vmem:[#allocation2] sm:$0x1] %vm9, %v8
    %v11 = vld [vmem:[#allocation3] sm:$0x1]
    %12 = vrot.lane.b32.xlu0 %v11, 64
    %v13 = vpop.permute.xlu0 %12
    %vm14 = vcmask 523264
    %s15 = scalar_lea.vmem [#allocation2], 1
    %16 = vst.msk [vmem:[%s15] sm:$0x1] %vm14, %v13
    %s18 = sshll.u32 1, 2
    %s19 = ssub.s32 %s18, 1
    %v21 = vld [vmem:[#allocation2] sm:%s19]
    %s22 = sshll.u32 1, 2
    %s23 = ssub.s32 %s22, 1
    %24 = vst [vmem:[#allocation0] sm:%s23] %v21
    %s26 = ssub.s32 32, 32
    %27 = vsyncadd [#allocation1], %s26
    %s29 = sshll.u32 [#allocation0], 4
    %s30 = int_to_ptr.vmem [resolvable:$true] %s29
    %32 = dma.vmem_to_hbm [thread:$0]  %s30, 32, %s1, [#allocation1]
    %33 = dma.done [#allocation1], 32
    %34 = vsyncpa [#allocation1], 1

// kernel: _lambda_.1
$region0: #{_lambda_.1}
  #allocation0 [shape = 'u32[]', space=smem, size = 0x4, offset = 0x4, fixed_abs, tag = 'smem constant byte address 0x4 - core index']
  #allocation1 [shape = 'u32[144,128]{1,0:T(1,128)}', space=vmem, size = 0x12000, scoped, tag = 'internal scratch']
  #allocation2 [shape = 'bf16[1024,128]{1,0:T(8,128)(2,1)}', space=vmem, size = 0x40000, scoped, tag = 'scratch operand']
  %s0 = inlined_call_operand.vmem [shape: f32[8,128], index: 0, kind: input, shape index: {}]
  %s1 = inlined_call_operand.vmem [shape: f32[32,128], index: 1, kind: input, shape index: {}]
  %s2 = inlined_call_operand.vmem [shape: f32[32,3], index: 2, kind: input, shape index: {}]
  %s3 = inlined_call_operand.vmem [shape: f32[32,1], index: 3, kind: input, shape index: {}]
  %s4 = inlined_call_operand.vmem [shape: bf16[128,1024], index: 4, kind: input, shape index: {}]
  %s5 = inlined_call_operand.vmem [shape: f32[128,1], index: 5, kind: input, shape index: {}]
  %s6 = inlined_call_operand.vmem [shape: f32[2], index: 6, kind: input, shape index: {}]
  %s7 = inlined_call_operand.vmem [shape: f32[128,128], index: 7, kind: output, shape index: {0}]
  %s8 = inlined_call_operand.vmem [shape: f32[32,128], index: 8, kind: output, shape index: {1}]
  %s9 = inlined_call_operand.vmem [shape: f32[4,128], index: 9, kind: output, shape index: {2}]
  %10 = xla_tuple %s7, %s8, %s9
  %s11 = sld [smem:[#allocation0]]
  $region65: #{_lambda_.1} parent=0
    _
  %s13 = ssub.s32 1, %s11
  %s14 = scalar_select 0, %s13, %s11
  $region1: #{_lambda_.1} parent=0
    #allocation3 [shape = 'u8[512]{0}', space=smem, size = 0x200, scoped, tag = 'input window, operand 6, single buffered']
    #allocation4 [shape = 's32[1]{0}', space=sflag, size = 0x4, scoped, tag = 'scoped memory for _lambda_.1']
    %15 = vsyncpa [#allocation4], 0
    // Predicated region
    $region2: #{_lambda_.1} parent=1 // pred_check
      _
    $region3: #{_lambda_.1} parent=1 // pred_check_branch
      %17 = sbr.rel (0) target = $region5
    $region4: #{_lambda_.1} parent=1 // pred_region
      _
    $region5: #{_lambda_.1} parent=1 // pred_fallthru
      _
    // Predicated region
    $region6: #{_lambda_.1} parent=1 // pred_check
      _
    $region7: #{_lambda_.1} parent=1 // pred_check_branch
      %19 = sbr.rel (0) target = $region9
    $region8: #{_lambda_.1} parent=1 // pred_region
      _
    $region9: #{_lambda_.1} parent=1 // pred_fallthru
      _
    // Predicated region
    $region10: #{_lambda_.1} parent=1 // pred_check
      _
    $region11: #{_lambda_.1} parent=1 // pred_check_branch
      %21 = sbr.rel (0) target = $region13
    $region12: #{_lambda_.1} parent=1 // pred_region
      _
    $region13: #{_lambda_.1} parent=1 // pred_fallthru
      _
    // Predicated region
    $region14: #{_lambda_.1} parent=1 // pred_check
      _
    $region15: #{_lambda_.1} parent=1 // pred_check_branch
      %23 = sbr.rel (0) target = $region17
    $region16: #{_lambda_.1} parent=1 // pred_region
      _
    $region17: #{_lambda_.1} parent=1 // pred_fallthru
      _
    // Predicated region
    $region18: #{_lambda_.1} parent=1 // pred_check
      _
    $region19: #{_lambda_.1} parent=1 // pred_check_branch
      %25 = sbr.rel (0) target = $region21
    $region20: #{_lambda_.1} parent=1 // pred_region
      _
    $region21: #{_lambda_.1} parent=1 // pred_fallthru
      _
    // Predicated region
    $region22: #{_lambda_.1} parent=1 // pred_check
      _
    $region23: #{_lambda_.1} parent=1 // pred_check_branch
      %27 = sbr.rel (0) target = $region25
    $region24: #{_lambda_.1} parent=1 // pred_region
      _
    $region25: #{_lambda_.1} parent=1 // pred_fallthru
      _
    // Predicated region
    $region26: #{_lambda_.1} parent=1 // pred_check
      _
    $region27: #{_lambda_.1} parent=1 // pred_check_branch
      %29 = sbr.rel (0) target = $region29
    $region28: #{_lambda_.1} parent=1 // pred_region
      %s31 = ssub.s32 16, 16
      %32 = vsyncadd [#allocation4], %s31
      %s34 = sshll.u32 %s6, 4
      %s35 = int_to_ptr.vmem [resolvable:$true] %s34
      %37 = dma.vmem_to_smem %s35, 16, [#allocation3], [#allocation4]
    $region29: #{_lambda_.1} parent=1 // pred_fallthru
      _
    // Predicated region
    $region30: #{_lambda_.1} parent=1 // pred_check
      _
    $region31: #{_lambda_.1} parent=1 // pred_check_branch
      %39 = sbr.rel (0) target = $region33
    $region32: #{_lambda_.1} parent=1 // pred_region
      %40 = dma.done [#allocation4], 16
    $region33: #{_lambda_.1} parent=1 // pred_fallthru
      _
    %41 = sfence
    %v43 = vld [vmem:[%s2] sm:$0xff]
    %v44 = vld [vmem:[%s2 + $0x8] sm:$0xff]
    %v45 = vld [vmem:[%s2 + $0x10] sm:$0xff]
    %v46 = vld [vmem:[%s2 + $0x18] sm:$0xff]
    %v47 = vld [vmem:[%s0] sm:$0x1]
    %v48 = vld [vmem:[%s0 + $0x1] sm:$0x1]
    %v49 = vld [vmem:[%s0 + $0x2] sm:$0x1]
    %v50 = vld [vmem:[%s0 + $0x3] sm:$0x1]
    %v51 = vld [vmem:[%s0 + $0x4] sm:$0x1]
    %v52 = vld [vmem:[%s0 + $0x5] sm:$0x1]
    %54 = vset.pattern.permute.xlu0 0
    %55 = vperm.xlu0 %54, %v43
    %v56 = vpop.permute.xlu0 %55
    %59 = vset.pattern.permute.xlu0 0
    %60 = vperm.xlu0 %59, %v44
    %v61 = vpop.permute.xlu0 %60
    %64 = vset.pattern.permute.xlu0 0
    %65 = vperm.xlu0 %64, %v45
    %v66 = vpop.permute.xlu0 %65
    %69 = vset.pattern.permute.xlu0 0
    %70 = vperm.xlu0 %69, %v46
    %v71 = vpop.permute.xlu0 %70
    %v73 = vlaneseq
    %v74 = vshrl.u32 %v73, 7
    %v75 = vsub.s32 0, %v74
    %v76 = vrot.slane %v47, %v75
    %v77 = vmul.f32 %v56, %v76
    %v78 = vmul.f32 %v61, %v76
    %v79 = vmul.f32 %v66, %v76
    %v80 = vmul.f32 %v71, %v76
    %81 = vset.pattern.permute.xlu0 1
    %82 = vperm.xlu0 %81, %v43
    %v83 = vpop.permute.xlu0 %82
    %85 = vset.pattern.permute.xlu0 1
    %86 = vperm.xlu0 %85, %v44
    %v87 = vpop.permute.xlu0 %86
    %89 = vset.pattern.permute.xlu0 1
    %90 = vperm.xlu0 %89, %v45
    %v91 = vpop.permute.xlu0 %90
    %93 = vset.pattern.permute.xlu0 1
    %94 = vperm.xlu0 %93, %v46
    %v95 = vpop.permute.xlu0 %94
    %v97 = vlaneseq
    %v98 = vshrl.u32 %v97, 7
    %v99 = vsub.s32 0, %v98
    %v100 = vrot.slane %v48, %v99
    %v101 = vmul.f32 %v83, %v100
    %v102 = vmul.f32 %v87, %v100
    %v103 = vmul.f32 %v91, %v100
    %v104 = vmul.f32 %v95, %v100
    %v105 = vadd.f32 %v77, %v101
    %v106 = vadd.f32 %v78, %v102
    %v107 = vadd.f32 %v79, %v103
    %v108 = vadd.f32 %v80, %v104
    %109 = vset.pattern.permute.xlu0 2
    %110 = vperm.xlu0 %109, %v43
    %v111 = vpop.permute.xlu0 %110
    %113 = vset.pattern.permute.xlu0 2
    %114 = vperm.xlu0 %113, %v44
    %v115 = vpop.permute.xlu0 %114
    %117 = vset.pattern.permute.xlu0 2
    %118 = vperm.xlu0 %117, %v45
    %v119 = vpop.permute.xlu0 %118
    %121 = vset.pattern.permute.xlu0 2
    %122 = vperm.xlu0 %121, %v46
    %v123 = vpop.permute.xlu0 %122
    %v125 = vlaneseq
    %v126 = vshrl.u32 %v125, 7
    %v127 = vsub.s32 0, %v126
    %v128 = vrot.slane %v49, %v127
    %v129 = vmul.f32 %v111, %v128
    %v130 = vmul.f32 %v115, %v128
    %v131 = vmul.f32 %v119, %v128
    %v132 = vmul.f32 %v123, %v128
    %v133 = vadd.f32 %v105, %v129
    %v134 = vadd.f32 %v106, %v130
    %v135 = vadd.f32 %v107, %v131
    %v136 = vadd.f32 %v108, %v132
    %v137 = vmul.f32 %v133, 2.0
    %v138 = vmul.f32 %v134, 2.0
    %v139 = vmul.f32 %v135, 2.0
    %v140 = vmul.f32 %v136, 2.0
    %v141 = vld [vmem:[%s3] sm:$0xff]
    %v142 = vld [vmem:[%s3 + $0x8] sm:$0xff]
    %v143 = vld [vmem:[%s3 + $0x10] sm:$0xff]
    %v144 = vld [vmem:[%s3 + $0x18] sm:$0xff]
    %146 = vset.pattern.permute.xlu0 0
    %147 = vperm.xlu0 %146, %v141
    %v148 = vpop.permute.xlu0 %147
    %151 = vset.pattern.permute.xlu0 0
    %152 = vperm.xlu0 %151, %v142
    %v153 = vpop.permute.xlu0 %152
    %156 = vset.pattern.permute.xlu0 0
    %157 = vperm.xlu0 %156, %v143
    %v158 = vpop.permute.xlu0 %157
    %161 = vset.pattern.permute.xlu0 0
    %162 = vperm.xlu0 %161, %v144
    %v163 = vpop.permute.xlu0 %162
    %v165 = vadd.f32 %v137, %v148
    %v166 = vadd.f32 %v138, %v153
    %v167 = vadd.f32 %v139, %v158
    %v168 = vadd.f32 %v140, %v163
    %v169 = vlaneseq
    %v170 = vshrl.u32 %v169, 7
    %v171 = vsub.s32 0, %v170
    %v172 = vrot.slane %v50, %v171
    %v173 = vmul.f32 %v56, %v172
    %v174 = vmul.f32 %v61, %v172
    %v175 = vmul.f32 %v66, %v172
    %v176 = vmul.f32 %v71, %v172
    %v177 = vlaneseq
    %v178 = vshrl.u32 %v177, 7
    %v179 = vsub.s32 0, %v178
    %v180 = vrot.slane %v51, %v179
    %v181 = vmul.f32 %v83, %v180
    %v182 = vmul.f32 %v87, %v180
    %v183 = vmul.f32 %v91, %v180
    %v184 = vmul.f32 %v95, %v180
    %v185 = vadd.f32 %v173, %v181
    %v186 = vadd.f32 %v174, %v182
    %v187 = vadd.f32 %v175, %v183
    %v188 = vadd.f32 %v176, %v184
    %v189 = vlaneseq
    %v190 = vshrl.u32 %v189, 7
    %v191 = vsub.s32 0, %v190
    %v192 = vrot.slane %v52, %v191
    %v193 = vmul.f32 %v111, %v192
    %v194 = vmul.f32 %v115, %v192
    %v195 = vmul.f32 %v119, %v192
    %v196 = vmul.f32 %v123, %v192
    %v197 = vadd.f32 %v185, %v193
    %v198 = vadd.f32 %v186, %v194
    %v199 = vadd.f32 %v187, %v195
    %v200 = vadd.f32 %v188, %v196
    %v201 = vmul.f32 %v197, 2.0
    %v202 = vmul.f32 %v198, 2.0
    %v203 = vmul.f32 %v199, 2.0
    %v204 = vmul.f32 %v200, 2.0
    loop: start=0, step=1, limit=32
    $region34: #{_lambda_.1} parent=1 // loop_pre_header
      _
    $region35: #{_lambda_.1} parent=1 // loop_header
      %s206 = sphi 0, %s210
      %p207 = scmp.ge.s32.totalorder %s206, 32
    $region36: #{_lambda_.1} parent=1 // loop_header_branch
      %209 = sbr.rel (%p207) target = $region40
    $region37: #{_lambda_.1} parent=1 // loop_body
      %s211 = scalar_lea.vmem %s1, %s206
      %v212 = vld [vmem:[%s211] sm:$0x1]
      %v213 = vlaneseq
      %v214 = vshrl.u32 %v213, 7
      %v215 = vsub.s32 0, %v214
      %v216 = vrot.slane %v212, %v215
      %v217 = vmul.f32 %v216, %v201
      %v218 = vmul.f32 %v216, %v202
      %v219 = vmul.f32 %v216, %v203
      %v220 = vmul.f32 %v216, %v204
      %v221 = vadd.f32 %v165, %v217
      %v222 = vadd.f32 %v166, %v218
      %v223 = vadd.f32 %v167, %v219
      %v224 = vadd.f32 %v168, %v220
      %v225 = vmax.f32 %v221, 0.0
      %v226 = vmax.f32 %v222, 0.0
      %v227 = vmax.f32 %v223, 0.0
      %v228 = vmax.f32 %v224, 0.0
      %v229 = vpack.c.bf16 %v226, %v225
      %v230 = vpack.c.bf16 %v228, %v227
      %s231 = smul.u32 %s206, 32
      %v234 = vunpack.c.l.b16 %v229
      %v235 = vunpack.c.h.b16 %v229
      %v236 = vunpack.c.l.b16 %v230
      %v237 = vunpack.c.h.b16 %v230
      %v238 = vpack.c.b16 %v234, %v234
      %v239 = vpack.c.b16 %v235, %v235
      %v240 = vpack.c.b16 %v236, %v236
      %v241 = vpack.c.b16 %v237, %v237
      %s246 = sshra.s32 %s231, 3
      %s247 = sand.u32 %s231, 7
      %s248 = smul.addr %s246, 4
      %s249 = scalar_lea.vmem [#allocation2], %s248
      %250 = vst [vmem:[%s249] sm:$0xf] %v238
      %251 = vst [vmem:[%s249 + $0x4] sm:$0xf] %v239
      %252 = vst [vmem:[%s249 + $0x8] sm:$0xf] %v240
      %253 = vst [vmem:[%s249 + $0xc] sm:$0xf] %v241
    $region38: #{_lambda_.1} parent=1 // loop_footer
      %s210 = sadd.s32 1, %s206
    $region39: #{_lambda_.1} parent=1 // loop_footer_branch
      %205 = sbr.rel target = $region35
    $region40: #{_lambda_.1} parent=1 // loop_exit
      _
    %v254 = vld [vmem:[%s4] sm:$0xff]
    %v255 = vld [vmem:[%s4 + $0x8] sm:$0xff]
    %v256 = vld [vmem:[%s4 + $0x10] sm:$0xff]
    %v257 = vld [vmem:[%s4 + $0x18] sm:$0xff]
    %v258 = vld [vmem:[%s4 + $0x20] sm:$0xff]
    %v259 = vld [vmem:[%s4 + $0x28] sm:$0xff]
    %v260 = vld [vmem:[%s4 + $0x30] sm:$0xff]
    %v261 = vld [vmem:[%s4 + $0x38] sm:$0xff]
    %v262 = vld [vmem:[%s4 + $0x40] sm:$0xff]
    %v263 = vld [vmem:[%s4 + $0x48] sm:$0xff]
    %v264 = vld [vmem:[%s4 + $0x50] sm:$0xff]
    %v265 = vld [vmem:[%s4 + $0x58] sm:$0xff]
    %v266 = vld [vmem:[%s4 + $0x60] sm:$0xff]
    %v267 = vld [vmem:[%s4 + $0x68] sm:$0xff]
    %v268 = vld [vmem:[%s4 + $0x70] sm:$0xff]
    %v269 = vld [vmem:[%s4 + $0x78] sm:$0xff]
    %v270 = vld [vmem:[%s4 + $0x80] sm:$0xff]
    %v271 = vld [vmem:[%s4 + $0x88] sm:$0xff]
    %v272 = vld [vmem:[%s4 + $0x90] sm:$0xff]
    %v273 = vld [vmem:[%s4 + $0x98] sm:$0xff]
    %v274 = vld [vmem:[%s4 + $0xa0] sm:$0xff]
    %v275 = vld [vmem:[%s4 + $0xa8] sm:$0xff]
    %v276 = vld [vmem:[%s4 + $0xb0] sm:$0xff]
    %v277 = vld [vmem:[%s4 + $0xb8] sm:$0xff]
    %v278 = vld [vmem:[%s4 + $0xc0] sm:$0xff]
    %v279 = vld [vmem:[%s4 + $0xc8] sm:$0xff]
    %v280 = vld [vmem:[%s4 + $0xd0] sm:$0xff]
    %v281 = vld [vmem:[%s4 + $0xd8] sm:$0xff]
    %v282 = vld [vmem:[%s4 + $0xe0] sm:$0xff]
    %v283 = vld [vmem:[%s4 + $0xe8] sm:$0xff]
    %v284 = vld [vmem:[%s4 + $0xf0] sm:$0xff]
    %v285 = vld [vmem:[%s4 + $0xf8] sm:$0xff]
    %v286 = vld [vmem:[%s4 + $0x100] sm:$0xff]
    %v287 = vld [vmem:[%s4 + $0x108] sm:$0xff]
    %v288 = vld [vmem:[%s4 + $0x110] sm:$0xff]
    %v289 = vld [vmem:[%s4 + $0x118] sm:$0xff]
    %v290 = vld [vmem:[%s4 + $0x120] sm:$0xff]
    %v291 = vld [vmem:[%s4 + $0x128] sm:$0xff]
    %v292 = vld [vmem:[%s4 + $0x130] sm:$0xff]
    %v293 = vld [vmem:[%s4 + $0x138] sm:$0xff]
    %v294 = vld [vmem:[%s4 + $0x140] sm:$0xff]
    %v295 = vld [vmem:[%s4 + $0x148] sm:$0xff]
    %v296 = vld [vmem:[%s4 + $0x150] sm:$0xff]
    %v297 = vld [vmem:[%s4 + $0x158] sm:$0xff]
    %v298 = vld [vmem:[%s4 + $0x160] sm:$0xff]
    %v299 = vld [vmem:[%s4 + $0x168] sm:$0xff]
    %v300 = vld [vmem:[%s4 + $0x170] sm:$0xff]
    %v301 = vld [vmem:[%s4 + $0x178] sm:$0xff]
    %v302 = vld [vmem:[%s4 + $0x180] sm:$0xff]
    %v303 = vld [vmem:[%s4 + $0x188] sm:$0xff]
    %v304 = vld [vmem:[%s4 + $0x190] sm:$0xff]
    %v305 = vld [vmem:[%s4 + $0x198] sm:$0xff]
    %v306 = vld [vmem:[%s4 + $0x1a0] sm:$0xff]
    %v307 = vld [vmem:[%s4 + $0x1a8] sm:$0xff]
    %v308 = vld [vmem:[%s4 + $0x1b0] sm:$0xff]
    %v309 = vld [vmem:[%s4 + $0x1b8] sm:$0xff]
    %v310 = vld [vmem:[%s4 + $0x1c0] sm:$0xff]
    %v311 = vld [vmem:[%s4 + $0x1c8] sm:$0xff]
    %v312 = vld [vmem:[%s4 + $0x1d0] sm:$0xff]
    %v313 = vld [vmem:[%s4 + $0x1d8] sm:$0xff]
    %v314 = vld [vmem:[%s4 + $0x1e0] sm:$0xff]
    %v315 = vld [vmem:[%s4 + $0x1e8] sm:$0xff]
    %v316 = vld [vmem:[%s4 + $0x1f0] sm:$0xff]
    %v317 = vld [vmem:[%s4 + $0x1f8] sm:$0xff]
    %v318 = vld [vmem:[#allocation2] sm:$0xf]
    %v319 = vld [vmem:[#allocation2 + $0x4] sm:$0xf]
    %v320 = vld [vmem:[#allocation2 + $0x8] sm:$0xf]
    %v321 = vld [vmem:[#allocation2 + $0xc] sm:$0xf]
    %v322 = vld [vmem:[#allocation2 + $0x10] sm:$0xf]
    %v323 = vld [vmem:[#allocation2 + $0x14] sm:$0xf]
    %v324 = vld [vmem:[#allocation2 + $0x18] sm:$0xf]
    %v325 = vld [vmem:[#allocation2 + $0x1c] sm:$0xf]
    %v326 = vld [vmem:[#allocation2 + $0x20] sm:$0xf]
    %v327 = vld [vmem:[#allocation2 + $0x24] sm:$0xf]
    %v328 = vld [vmem:[#allocation2 + $0x28] sm:$0xf]
    %v329 = vld [vmem:[#allocation2 + $0x2c] sm:$0xf]
    %v330 = vld [vmem:[#allocation2 + $0x30] sm:$0xf]
    %v331 = vld [vmem:[#allocation2 + $0x34] sm:$0xf]
    %v332 = vld [vmem:[#allocation2 + $0x38] sm:$0xf]
    %v333 = vld [vmem:[#allocation2 + $0x3c] sm:$0xf]
    %v334 = vld [vmem:[#allocation2 + $0x40] sm:$0xf]
    %v335 = vld [vmem:[#allocation2 + $0x44] sm:$0xf]
    %v336 = vld [vmem:[#allocation2 + $0x48] sm:$0xf]
    %v337 = vld [vmem:[#allocation2 + $0x4c] sm:$0xf]
    %v338 = vld [vmem:[#allocation2 + $0x50] sm:$0xf]
    %v339 = vld [vmem:[#allocation2 + $0x54] sm:$0xf]
    %v340 = vld [vmem:[#allocation2 + $0x58] sm:$0xf]
    %v341 = vld [vmem:[#allocation2 + $0x5c] sm:$0xf]
    %v342 = vld [vmem:[#allocation2 + $0x60] sm:$0xf]
    %v343 = vld [vmem:[#allocation2 + $0x64] sm:$0xf]
    %v344 = vld [vmem:[#allocation2 + $0x68] sm:$0xf]
    %v345 = vld [vmem:[#allocation2 + $0x6c] sm:$0xf]
    %v346 = vld [vmem:[#allocation2 + $0x70] sm:$0xf]
    %v347 = vld [vmem:[#allocation2 + $0x74] sm:$0xf]
    %v348 = vld [vmem:[#allocation2 + $0x78] sm:$0xf]
    %v349 = vld [vmem:[#allocation2 + $0x7c] sm:$0xf]
    %v350 = vld [vmem:[#allocation2 + $0x80] sm:$0xf]
    %v351 = vld [vmem:[#allocation2 + $0x84] sm:$0xf]
    %v352 = vld [vmem:[#allocation2 + $0x88] sm:$0xf]
    %v353 = vld [vmem:[#allocation2 + $0x8c] sm:$0xf]
    %v354 = vld [vmem:[#allocation2 + $0x90] sm:$0xf]
    %v355 = vld [vmem:[#allocation2 + $0x94] sm:$0xf]
    %v356 = vld [vmem:[#allocation2 + $0x98] sm:$0xf]
    %v357 = vld [vmem:[#allocation2 + $0x9c] sm:$0xf]
    %v358 = vld [vmem:[#allocation2 + $0xa0] sm:$0xf]
    %v359 = vld [vmem:[#allocation2 + $0xa4] sm:$0xf]
    %v360 = vld [vmem:[#allocation2 + $0xa8] sm:$0xf]
    %v361 = vld [vmem:[#allocation2 + $0xac] sm:$0xf]
    %v362 = vld [vmem:[#allocation2 + $0xb0] sm:$0xf]
    %v363 = vld [vmem:[#allocation2 + $0xb4] sm:$0xf]
    %v364 = vld [vmem:[#allocation2 + $0xb8] sm:$0xf]
    %v365 = vld [vmem:[#allocation2 + $0xbc] sm:$0xf]
    %v366 = vld [vmem:[#allocation2 + $0xc0] sm:$0xf]
    %v367 = vld [vmem:[#allocation2 + $0xc4] sm:$0xf]
    %v368 = vld [vmem:[#allocation2 + $0xc8] sm:$0xf]
    %v369 = vld [vmem:[#allocation2 + $0xcc] sm:$0xf]
    %v370 = vld [vmem:[#allocation2 + $0xd0] sm:$0xf]
    %v371 = vld [vmem:[#allocation2 + $0xd4] sm:$0xf]
    %v372 = vld [vmem:[#allocation2 + $0xd8] sm:$0xf]
    %v373 = vld [vmem:[#allocation2 + $0xdc] sm:$0xf]
    %v374 = vld [vmem:[#allocation2 + $0xe0] sm:$0xf]
    %v375 = vld [vmem:[#allocation2 + $0xe4] sm:$0xf]
    %v376 = vld [vmem:[#allocation2 + $0xe8] sm:$0xf]
    %v377 = vld [vmem:[#allocation2 + $0xec] sm:$0xf]
    %v378 = vld [vmem:[#allocation2 + $0xf0] sm:$0xf]
    %v379 = vld [vmem:[#allocation2 + $0xf4] sm:$0xf]
    %v380 = vld [vmem:[#allocation2 + $0xf8] sm:$0xf]
    %v381 = vld [vmem:[#allocation2 + $0xfc] sm:$0xf]
    %v382 = vld [vmem:[#allocation2 + $0x100] sm:$0xf]
    %v383 = vld [vmem:[#allocation2 + $0x104] sm:$0xf]
    %v384 = vld [vmem:[#allocation2 + $0x108] sm:$0xf]
    %v385 = vld [vmem:[#allocation2 + $0x10c] sm:$0xf]
    %v386 = vld [vmem:[#allocation2 + $0x110] sm:$0xf]
    %v387 = vld [vmem:[#allocation2 + $0x114] sm:$0xf]
    %v388 = vld [vmem:[#allocation2 + $0x118] sm:$0xf]
    %v389 = vld [vmem:[#allocation2 + $0x11c] sm:$0xf]
    %v390 = vld [vmem:[#allocation2 + $0x120] sm:$0xf]
    %v391 = vld [vmem:[#allocation2 + $0x124] sm:$0xf]
    %v392 = vld [vmem:[#allocation2 + $0x128] sm:$0xf]
    %v393 = vld [vmem:[#allocation2 + $0x12c] sm:$0xf]
    %v394 = vld [vmem:[#allocation2 + $0x130] sm:$0xf]
    %v395 = vld [vmem:[#allocation2 + $0x134] sm:$0xf]
    %v396 = vld [vmem:[#allocation2 + $0x138] sm:$0xf]
    %v397 = vld [vmem:[#allocation2 + $0x13c] sm:$0xf]
    %v398 = vld [vmem:[#allocation2 + $0x140] sm:$0xf]
    %v399 = vld [vmem:[#allocation2 + $0x144] sm:$0xf]
    %v400 = vld [vmem:[#allocation2 + $0x148] sm:$0xf]
    %v401 = vld [vmem:[#allocation2 + $0x14c] sm:$0xf]
    %v402 = vld [vmem:[#allocation2 + $0x150] sm:$0xf]
    %v403 = vld [vmem:[#allocation2 + $0x154] sm:$0xf]
    %v404 = vld [vmem:[#allocation2 + $0x158] sm:$0xf]
    %v405 = vld [vmem:[#allocation2 + $0x15c] sm:$0xf]
    %v406 = vld [vmem:[#allocation2 + $0x160] sm:$0xf]
    %v407 = vld [vmem:[#allocation2 + $0x164] sm:$0xf]
    %v408 = vld [vmem:[#allocation2 + $0x168] sm:$0xf]
    %v409 = vld [vmem:[#allocation2 + $0x16c] sm:$0xf]
    %v410 = vld [vmem:[#allocation2 + $0x170] sm:$0xf]
    %v411 = vld [vmem:[#allocation2 + $0x174] sm:$0xf]
    %v412 = vld [vmem:[#allocation2 + $0x178] sm:$0xf]
    %v413 = vld [vmem:[#allocation2 + $0x17c] sm:$0xf]
    %v414 = vld [vmem:[#allocation2 + $0x180] sm:$0xf]
    %v415 = vld [vmem:[#allocation2 + $0x184] sm:$0xf]
    %v416 = vld [vmem:[#allocation2 + $0x188] sm:$0xf]
    %v417 = vld [vmem:[#allocation2 + $0x18c] sm:$0xf]
    %v418 = vld [vmem:[#allocation2 + $0x190] sm:$0xf]
    %v419 = vld [vmem:[#allocation2 + $0x194] sm:$0xf]
    %v420 = vld [vmem:[#allocation2 + $0x198] sm:$0xf]
    %v421 = vld [vmem:[#allocation2 + $0x19c] sm:$0xf]
    %v422 = vld [vmem:[#allocation2 + $0x1a0] sm:$0xf]
    %v423 = vld [vmem:[#allocation2 + $0x1a4] sm:$0xf]
    %v424 = vld [vmem:[#allocation2 + $0x1a8] sm:$0xf]
    %v425 = vld [vmem:[#allocation2 + $0x1ac] sm:$0xf]
    %v426 = vld [vmem:[#allocation2 + $0x1b0] sm:$0xf]
    %v427 = vld [vmem:[#allocation2 + $0x1b4] sm:$0xf]
    %v428 = vld [vmem:[#allocation2 + $0x1b8] sm:$0xf]
    %v429 = vld [vmem:[#allocation2 + $0x1bc] sm:$0xf]
    %v430 = vld [vmem:[#allocation2 + $0x1c0] sm:$0xf]
    %v431 = vld [vmem:[#allocation2 + $0x1c4] sm:$0xf]
    %v432 = vld [vmem:[#allocation2 + $0x1c8] sm:$0xf]
    %v433 = vld [vmem:[#allocation2 + $0x1cc] sm:$0xf]
    %v434 = vld [vmem:[#allocation2 + $0x1d0] sm:$0xf]
    %v435 = vld [vmem:[#allocation2 + $0x1d4] sm:$0xf]
    %v436 = vld [vmem:[#allocation2 + $0x1d8] sm:$0xf]
    %v437 = vld [vmem:[#allocation2 + $0x1dc] sm:$0xf]
    %v438 = vld [vmem:[#allocation2 + $0x1e0] sm:$0xf]
    %v439 = vld [vmem:[#allocation2 + $0x1e4] sm:$0xf]
    %v440 = vld [vmem:[#allocation2 + $0x1e8] sm:$0xf]
    %v441 = vld [vmem:[#allocation2 + $0x1ec] sm:$0xf]
    %v442 = vld [vmem:[#allocation2 + $0x1f0] sm:$0xf]
    %v443 = vld [vmem:[#allocation2 + $0x1f4] sm:$0xf]
    %v444 = vld [vmem:[#allocation2 + $0x1f8] sm:$0xf]
    %v445 = vld [vmem:[#allocation2 + $0x1fc] sm:$0xf]
    %v446 = vld [vmem:[%s5] sm:$0xff]
    %v447 = vld [vmem:[%s5 + $0x8] sm:$0xff]
    %v448 = vld [vmem:[%s5 + $0x10] sm:$0xff]
    %v449 = vld [vmem:[%s5 + $0x18] sm:$0xff]
    %v450 = vld [vmem:[%s5 + $0x20] sm:$0xff]
    %v451 = vld [vmem:[%s5 + $0x28] sm:$0xff]
    %v452 = vld [vmem:[%s5 + $0x30] sm:$0xff]
    %v453 = vld [vmem:[%s5 + $0x38] sm:$0xff]
    %v454 = vld [vmem:[%s5 + $0x40] sm:$0xff]
    %v455 = vld [vmem:[%s5 + $0x48] sm:$0xff]
    %v456 = vld [vmem:[%s5 + $0x50] sm:$0xff]
    %v457 = vld [vmem:[%s5 + $0x58] sm:$0xff]
    %v458 = vld [vmem:[%s5 + $0x60] sm:$0xff]
    %v459 = vld [vmem:[%s5 + $0x68] sm:$0xff]
    %v460 = vld [vmem:[%s5 + $0x70] sm:$0xff]
    %v461 = vld [vmem:[%s5 + $0x78] sm:$0xff]
    %463 = vset.pattern.permute.xlu0 0
    %464 = vperm.xlu0 %463, %v446
    %v465 = vpop.permute.xlu0 %464
    %468 = vset.pattern.permute.xlu0 0
    %469 = vperm.xlu0 %468, %v447
    %v470 = vpop.permute.xlu0 %469
    %473 = vset.pattern.permute.xlu0 0
    %474 = vperm.xlu0 %473, %v448
    %v475 = vpop.permute.xlu0 %474
    %478 = vset.pattern.permute.xlu0 0
    %479 = vperm.xlu0 %478, %v449
    %v480 = vpop.permute.xlu0 %479
    %483 = vset.pattern.permute.xlu0 0
    %484 = vperm.xlu0 %483, %v450
    %v485 = vpop.permute.xlu0 %484
    %488 = vset.pattern.permute.xlu0 0
    %489 = vperm.xlu0 %488, %v451
    %v490 = vpop.permute.xlu0 %489
    %493 = vset.pattern.permute.xlu0 0
    %494 = vperm.xlu0 %493, %v452
    %v495 = vpop.permute.xlu0 %494
    %498 = vset.pattern.permute.xlu0 0
    %499 = vperm.xlu0 %498, %v453
    %v500 = vpop.permute.xlu0 %499
    %503 = vset.pattern.permute.xlu0 0
    %504 = vperm.xlu0 %503, %v454
    %v505 = vpop.permute.xlu0 %504
    %508 = vset.pattern.permute.xlu0 0
    %509 = vperm.xlu0 %508, %v455
    %v510 = vpop.permute.xlu0 %509
    %513 = vset.pattern.permute.xlu0 0
    %514 = vperm.xlu0 %513, %v456
    %v515 = vpop.permute.xlu0 %514
    %518 = vset.pattern.permute.xlu0 0
    %519 = vperm.xlu0 %518, %v457
    %v520 = vpop.permute.xlu0 %519
    %523 = vset.pattern.permute.xlu0 0
    %524 = vperm.xlu0 %523, %v458
    %v525 = vpop.permute.xlu0 %524
    %528 = vset.pattern.permute.xlu0 0
    %529 = vperm.xlu0 %528, %v459
    %v530 = vpop.permute.xlu0 %529
    %533 = vset.pattern.permute.xlu0 0
    %534 = vperm.xlu0 %533, %v460
    %v535 = vpop.permute.xlu0 %534
    %538 = vset.pattern.permute.xlu0 0
    %539 = vperm.xlu0 %538, %v461
    %v540 = vpop.permute.xlu0 %539
    %v606 = vunpack.c.l.b16 %v254
    %v607 = vunpack.c.h.b16 %v254
    %v608 = vunpack.c.l.b16 %v255
    %v609 = vunpack.c.h.b16 %v255
    %v610 = vunpack.c.l.b16 %v256
    %v611 = vunpack.c.h.b16 %v256
    %v612 = vunpack.c.l.b16 %v257
    %v613 = vunpack.c.h.b16 %v257
    %v614 = vunpack.c.l.b16 %v258
    %v615 = vunpack.c.h.b16 %v258
    %v616 = vunpack.c.l.b16 %v259
    %v617 = vunpack.c.h.b16 %v259
    %v618 = vunpack.c.l.b16 %v260
    %v619 = vunpack.c.h.b16 %v260
    %v620 = vunpack.c.l.b16 %v261
    %v621 = vunpack.c.h.b16 %v261
    %v622 = vunpack.c.l.b16 %v262
    %v623 = vunpack.c.h.b16 %v262
    %v624 = vunpack.c.l.b16 %v263
    %v625 = vunpack.c.h.b16 %v263
    %v626 = vunpack.c.l.b16 %v264
    %v627 = vunpack.c.h.b16 %v264
    %v628 = vunpack.c.l.b16 %v265
    %v629 = vunpack.c.h.b16 %v265
    %v630 = vunpack.c.l.b16 %v266
    %v631 = vunpack.c.h.b16 %v266
    %v632 = vunpack.c.l.b16 %v267
    %v633 = vunpack.c.h.b16 %v267
    %v634 = vunpack.c.l.b16 %v268
    %v635 = vunpack.c.h.b16 %v268
    %v636 = vunpack.c.l.b16 %v269
    %v637 = vunpack.c.h.b16 %v269
    %v638 = vunpack.c.l.b16 %v270
    %v639 = vunpack.c.h.b16 %v270
    %v640 = vunpack.c.l.b16 %v271
    %v641 = vunpack.c.h.b16 %v271
    %v642 = vunpack.c.l.b16 %v272
    %v643 = vunpack.c.h.b16 %v272
    %v644 = vunpack.c.l.b16 %v273
    %v645 = vunpack.c.h.b16 %v273
    %v646 = vunpack.c.l.b16 %v274
    %v647 = vunpack.c.h.b16 %v274
    %v648 = vunpack.c.l.b16 %v275
    %v649 = vunpack.c.h.b16 %v275
    %v650 = vunpack.c.l.b16 %v276
    %v651 = vunpack.c.h.b16 %v276
    %v652 = vunpack.c.l.b16 %v277
    %v653 = vunpack.c.h.b16 %v277
    %v654 = vunpack.c.l.b16 %v278
    %v655 = vunpack.c.h.b16 %v278
    %v656 = vunpack.c.l.b16 %v279
    %v657 = vunpack.c.h.b16 %v279
    %v658 = vunpack.c.l.b16 %v280
    %v659 = vunpack.c.h.b16 %v280
    %v660 = vunpack.c.l.b16 %v281
    %v661 = vunpack.c.h.b16 %v281
    %v662 = vunpack.c.l.b16 %v282
    %v663 = vunpack.c.h.b16 %v282
    %v664 = vunpack.c.l.b16 %v283
    %v665 = vunpack.c.h.b16 %v283
    %v666 = vunpack.c.l.b16 %v284
    %v667 = vunpack.c.h.b16 %v284
    %v668 = vunpack.c.l.b16 %v285
    %v669 = vunpack.c.h.b16 %v285
    %v670 = vunpack.c.l.b16 %v286
    %v671 = vunpack.c.h.b16 %v286
    %v672 = vunpack.c.l.b16 %v287
    %v673 = vunpack.c.h.b16 %v287
    %v674 = vunpack.c.l.b16 %v288
    %v675 = vunpack.c.h.b16 %v288
    %v676 = vunpack.c.l.b16 %v289
    %v677 = vunpack.c.h.b16 %v289
    %v678 = vunpack.c.l.b16 %v290
    %v679 = vunpack.c.h.b16 %v290
    %v680 = vunpack.c.l.b16 %v291
    %v681 = vunpack.c.h.b16 %v291
    %v682 = vunpack.c.l.b16 %v292
    %v683 = vunpack.c.h.b16 %v292
    %v684 = vunpack.c.l.b16 %v293
    %v685 = vunpack.c.h.b16 %v293
    %v686 = vunpack.c.l.b16 %v294
    %v687 = vunpack.c.h.b16 %v294
    %v688 = vunpack.c.l.b16 %v295
    %v689 = vunpack.c.h.b16 %v295
    %v690 = vunpack.c.l.b16 %v296
    %v691 = vunpack.c.h.b16 %v296
    %v692 = vunpack.c.l.b16 %v297
    %v693 = vunpack.c.h.b16 %v297
    %v694 = vunpack.c.l.b16 %v298
    %v695 = vunpack.c.h.b16 %v298
    %v696 = vunpack.c.l.b16 %v299
    %v697 = vunpack.c.h.b16 %v299
    %v698 = vunpack.c.l.b16 %v300
    %v699 = vunpack.c.h.b16 %v300
    %v700 = vunpack.c.l.b16 %v301
    %v701 = vunpack.c.h.b16 %v301
    %v702 = vunpack.c.l.b16 %v302
    %v703 = vunpack.c.h.b16 %v302
    %v704 = vunpack.c.l.b16 %v303
    %v705 = vunpack.c.h.b16 %v303
    %v706 = vunpack.c.l.b16 %v304
    %v707 = vunpack.c.h.b16 %v304
    %v708 = vunpack.c.l.b16 %v305
    %v709 = vunpack.c.h.b16 %v305
    %v710 = vunpack.c.l.b16 %v306
    %v711 = vunpack.c.h.b16 %v306
    %v712 = vunpack.c.l.b16 %v307
    %v713 = vunpack.c.h.b16 %v307
    %v714 = vunpack.c.l.b16 %v308
    %v715 = vunpack.c.h.b16 %v308
    %v716 = vunpack.c.l.b16 %v309
    %v717 = vunpack.c.h.b16 %v309
    %v718 = vunpack.c.l.b16 %v310
    %v719 = vunpack.c.h.b16 %v310
    %v720 = vunpack.c.l.b16 %v311
    %v721 = vunpack.c.h.b16 %v311
    %v722 = vunpack.c.l.b16 %v312
    %v723 = vunpack.c.h.b16 %v312
    %v724 = vunpack.c.l.b16 %v313
    %v725 = vunpack.c.h.b16 %v313
    %v726 = vunpack.c.l.b16 %v314
    %v727 = vunpack.c.h.b16 %v314
    %v728 = vunpack.c.l.b16 %v315
    %v729 = vunpack.c.h.b16 %v315
    %v730 = vunpack.c.l.b16 %v316
    %v731 = vunpack.c.h.b16 %v316
    %v732 = vunpack.c.l.b16 %v317
    %v733 = vunpack.c.h.b16 %v317
    %v734 = vpack.c.b16 %v614, %v606
    %v735 = vpack.c.b16 %v615, %v607
    %v736 = vpack.c.b16 %v616, %v608
    %v737 = vpack.c.b16 %v617, %v609
    %v738 = vpack.c.b16 %v618, %v610
    %v739 = vpack.c.b16 %v619, %v611
    %v740 = vpack.c.b16 %v620, %v612
    %v741 = vpack.c.b16 %v621, %v613
    %v742 = vpack.c.b16 %v630, %v622
    %v743 = vpack.c.b16 %v631, %v623
    %v744 = vpack.c.b16 %v632, %v624
    %v745 = vpack.c.b16 %v633, %v625
    %v746 = vpack.c.b16 %v634, %v626
    %v747 = vpack.c.b16 %v635, %v627
    %v748 = vpack.c.b16 %v636, %v628
    %v749 = vpack.c.b16 %v637, %v629
    %v750 = vpack.c.b16 %v646, %v638
    %v751 = vpack.c.b16 %v647, %v639
    %v752 = vpack.c.b16 %v648, %v640
    %v753 = vpack.c.b16 %v649, %v641
    %v754 = vpack.c.b16 %v650, %v642
    %v755 = vpack.c.b16 %v651, %v643
    %v756 = vpack.c.b16 %v652, %v644
    %v757 = vpack.c.b16 %v653, %v645
    %v758 = vpack.c.b16 %v662, %v654
    %v759 = vpack.c.b16 %v663, %v655
    %v760 = vpack.c.b16 %v664, %v656
    %v761 = vpack.c.b16 %v665, %v657
    %v762 = vpack.c.b16 %v666, %v658
    %v763 = vpack.c.b16 %v667, %v659
    %v764 = vpack.c.b16 %v668, %v660
    %v765 = vpack.c.b16 %v669, %v661
    %v766 = vpack.c.b16 %v678, %v670
    %v767 = vpack.c.b16 %v679, %v671
    %v768 = vpack.c.b16 %v680, %v672
    %v769 = vpack.c.b16 %v681, %v673
    %v770 = vpack.c.b16 %v682, %v674
    %v771 = vpack.c.b16 %v683, %v675
    %v772 = vpack.c.b16 %v684, %v676
    %v773 = vpack.c.b16 %v685, %v677
    %v774 = vpack.c.b16 %v694, %v686
    %v775 = vpack.c.b16 %v695, %v687
    %v776 = vpack.c.b16 %v696, %v688
    %v777 = vpack.c.b16 %v697, %v689
    %v778 = vpack.c.b16 %v698, %v690
    %v779 = vpack.c.b16 %v699, %v691
    %v780 = vpack.c.b16 %v700, %v692
    %v781 = vpack.c.b16 %v701, %v693
    %v782 = vpack.c.b16 %v710, %v702
    %v783 = vpack.c.b16 %v711, %v703
    %v784 = vpack.c.b16 %v712, %v704
    %v785 = vpack.c.b16 %v713, %v705
    %v786 = vpack.c.b16 %v714, %v706
    %v787 = vpack.c.b16 %v715, %v707
    %v788 = vpack.c.b16 %v716, %v708
    %v789 = vpack.c.b16 %v717, %v709
    %v790 = vpack.c.b16 %v726, %v718
    %v791 = vpack.c.b16 %v727, %v719
    %v792 = vpack.c.b16 %v728, %v720
    %v793 = vpack.c.b16 %v729, %v721
    %v794 = vpack.c.b16 %v730, %v722
    %v795 = vpack.c.b16 %v731, %v723
    %v796 = vpack.c.b16 %v732, %v724
    %v797 = vpack.c.b16 %v733, %v725
    %v990 = vunpack.c.l.b16 %v318
    %v991 = vunpack.c.l.b16 %v319
    %v992 = vunpack.c.l.b16 %v320
    %v993 = vunpack.c.l.b16 %v321
    %v994 = vunpack.c.l.b16 %v322
    %v995 = vunpack.c.l.b16 %v323
    %v996 = vunpack.c.l.b16 %v324
    %v997 = vunpack.c.l.b16 %v325
    %v998 = vunpack.c.l.b16 %v326
    %v999 = vunpack.c.l.b16 %v327
    %v1000 = vunpack.c.l.b16 %v328
    %v1001 = vunpack.c.l.b16 %v329
    %v1002 = vunpack.c.l.b16 %v330
    %v1003 = vunpack.c.l.b16 %v331
    %v1004 = vunpack.c.l.b16 %v332
    %v1005 = vunpack.c.l.b16 %v333
    %v1006 = vunpack.c.l.b16 %v334
    %v1007 = vunpack.c.l.b16 %v335
    %v1008 = vunpack.c.l.b16 %v336
    %v1009 = vunpack.c.l.b16 %v337
    %v1010 = vunpack.c.l.b16 %v338
    %v1011 = vunpack.c.l.b16 %v339
    %v1012 = vunpack.c.l.b16 %v340
    %v1013 = vunpack.c.l.b16 %v341
    %v1014 = vunpack.c.l.b16 %v342
    %v1015 = vunpack.c.l.b16 %v343
    %v1016 = vunpack.c.l.b16 %v344
    %v1017 = vunpack.c.l.b16 %v345
    %v1018 = vunpack.c.l.b16 %v346
    %v1019 = vunpack.c.l.b16 %v347
    %v1020 = vunpack.c.l.b16 %v348
    %v1021 = vunpack.c.l.b16 %v349
    %v1022 = vunpack.c.l.b16 %v350
    %v1023 = vunpack.c.l.b16 %v351
    %v1024 = vunpack.c.l.b16 %v352
    %v1025 = vunpack.c.l.b16 %v353
    %v1026 = vunpack.c.l.b16 %v354
    %v1027 = vunpack.c.l.b16 %v355
    %v1028 = vunpack.c.l.b16 %v356
    %v1029 = vunpack.c.l.b16 %v357
    %v1030 = vunpack.c.l.b16 %v358
    %v1031 = vunpack.c.l.b16 %v359
    %v1032 = vunpack.c.l.b16 %v360
    %v1033 = vunpack.c.l.b16 %v361
    %v1034 = vunpack.c.l.b16 %v362
    %v1035 = vunpack.c.l.b16 %v363
    %v1036 = vunpack.c.l.b16 %v364
    %v1037 = vunpack.c.l.b16 %v365
    %v1038 = vunpack.c.l.b16 %v366
    %v1039 = vunpack.c.l.b16 %v367
    %v1040 = vunpack.c.l.b16 %v368
    %v1041 = vunpack.c.l.b16 %v369
    %v1042 = vunpack.c.l.b16 %v370
    %v1043 = vunpack.c.l.b16 %v371
    %v1044 = vunpack.c.l.b16 %v372
    %v1045 = vunpack.c.l.b16 %v373
    %v1046 = vunpack.c.l.b16 %v374
    %v1047 = vunpack.c.l.b16 %v375
    %v1048 = vunpack.c.l.b16 %v376
    %v1049 = vunpack.c.l.b16 %v377
    %v1050 = vunpack.c.l.b16 %v378
    %v1051 = vunpack.c.l.b16 %v379
    %v1052 = vunpack.c.l.b16 %v380
    %v1053 = vunpack.c.l.b16 %v381
    %v1054 = vunpack.c.l.b16 %v382
    %v1055 = vunpack.c.l.b16 %v383
    %v1056 = vunpack.c.l.b16 %v384
    %v1057 = vunpack.c.l.b16 %v385
    %v1058 = vunpack.c.l.b16 %v386
    %v1059 = vunpack.c.l.b16 %v387
    %v1060 = vunpack.c.l.b16 %v388
    %v1061 = vunpack.c.l.b16 %v389
    %v1062 = vunpack.c.l.b16 %v390
    %v1063 = vunpack.c.l.b16 %v391
    %v1064 = vunpack.c.l.b16 %v392
    %v1065 = vunpack.c.l.b16 %v393
    %v1066 = vunpack.c.l.b16 %v394
    %v1067 = vunpack.c.l.b16 %v395
    %v1068 = vunpack.c.l.b16 %v396
    %v1069 = vunpack.c.l.b16 %v397
    %v1070 = vunpack.c.l.b16 %v398
    %v1071 = vunpack.c.l.b16 %v399
    %v1072 = vunpack.c.l.b16 %v400
    %v1073 = vunpack.c.l.b16 %v401
    %v1074 = vunpack.c.l.b16 %v402
    %v1075 = vunpack.c.l.b16 %v403
    %v1076 = vunpack.c.l.b16 %v404
    %v1077 = vunpack.c.l.b16 %v405
    %v1078 = vunpack.c.l.b16 %v406
    %v1079 = vunpack.c.l.b16 %v407
    %v1080 = vunpack.c.l.b16 %v408
    %v1081 = vunpack.c.l.b16 %v409
    %v1082 = vunpack.c.l.b16 %v410
    %v1083 = vunpack.c.l.b16 %v411
    %v1084 = vunpack.c.l.b16 %v412
    %v1085 = vunpack.c.l.b16 %v413
    %v1086 = vunpack.c.l.b16 %v414
    %v1087 = vunpack.c.l.b16 %v415
    %v1088 = vunpack.c.l.b16 %v416
    %v1089 = vunpack.c.l.b16 %v417
    %v1090 = vunpack.c.l.b16 %v418
    %v1091 = vunpack.c.l.b16 %v419
    %v1092 = vunpack.c.l.b16 %v420
    %v1093 = vunpack.c.l.b16 %v421
    %v1094 = vunpack.c.l.b16 %v422
    %v1095 = vunpack.c.l.b16 %v423
    %v1096 = vunpack.c.l.b16 %v424
    %v1097 = vunpack.c.l.b16 %v425
    %v1098 = vunpack.c.l.b16 %v426
    %v1099 = vunpack.c.l.b16 %v427
    %v1100 = vunpack.c.l.b16 %v428
    %v1101 = vunpack.c.l.b16 %v429
    %v1102 = vunpack.c.l.b16 %v430
    %v1103 = vunpack.c.l.b16 %v431
    %v1104 = vunpack.c.l.b16 %v432
    %v1105 = vunpack.c.l.b16 %v433
    %v1106 = vunpack.c.l.b16 %v434
    %v1107 = vunpack.c.l.b16 %v435
    %v1108 = vunpack.c.l.b16 %v436
    %v1109 = vunpack.c.l.b16 %v437
    %v1110 = vunpack.c.l.b16 %v438
    %v1111 = vunpack.c.l.b16 %v439
    %v1112 = vunpack.c.l.b16 %v440
    %v1113 = vunpack.c.l.b16 %v441
    %v1114 = vunpack.c.l.b16 %v442
    %v1115 = vunpack.c.l.b16 %v443
    %v1116 = vunpack.c.l.b16 %v444
    %v1117 = vunpack.c.l.b16 %v445
    %v1118 = vpack.c.b16 %v991, %v990
    %v1119 = vpack.c.b16 %v993, %v992
    %v1120 = vpack.c.b16 %v995, %v994
    %v1121 = vpack.c.b16 %v997, %v996
    %v1122 = vpack.c.b16 %v999, %v998
    %v1123 = vpack.c.b16 %v1001, %v1000
    %v1124 = vpack.c.b16 %v1003, %v1002
    %v1125 = vpack.c.b16 %v1005, %v1004
    %v1126 = vpack.c.b16 %v1007, %v1006
    %v1127 = vpack.c.b16 %v1009, %v1008
    %v1128 = vpack.c.b16 %v1011, %v1010
    %v1129 = vpack.c.b16 %v1013, %v1012
    %v1130 = vpack.c.b16 %v1015, %v1014
    %v1131 = vpack.c.b16 %v1017, %v1016
    %v1132 = vpack.c.b16 %v1019, %v1018
    %v1133 = vpack.c.b16 %v1021, %v1020
    %v1134 = vpack.c.b16 %v1023, %v1022
    %v1135 = vpack.c.b16 %v1025, %v1024
    %v1136 = vpack.c.b16 %v1027, %v1026
    %v1137 = vpack.c.b16 %v1029, %v1028
    %v1138 = vpack.c.b16 %v1031, %v1030
    %v1139 = vpack.c.b16 %v1033, %v1032
    %v1140 = vpack.c.b16 %v1035, %v1034
    %v1141 = vpack.c.b16 %v1037, %v1036
    %v1142 = vpack.c.b16 %v1039, %v1038
    %v1143 = vpack.c.b16 %v1041, %v1040
    %v1144 = vpack.c.b16 %v1043, %v1042
    %v1145 = vpack.c.b16 %v1045, %v1044
    %v1146 = vpack.c.b16 %v1047, %v1046
    %v1147 = vpack.c.b16 %v1049, %v1048
    %v1148 = vpack.c.b16 %v1051, %v1050
    %v1149 = vpack.c.b16 %v1053, %v1052
    %v1150 = vpack.c.b16 %v1055, %v1054
    %v1151 = vpack.c.b16 %v1057, %v1056
    %v1152 = vpack.c.b16 %v1059, %v1058
    %v1153 = vpack.c.b16 %v1061, %v1060
    %v1154 = vpack.c.b16 %v1063, %v1062
    %v1155 = vpack.c.b16 %v1065, %v1064
    %v1156 = vpack.c.b16 %v1067, %v1066
    %v1157 = vpack.c.b16 %v1069, %v1068
    %v1158 = vpack.c.b16 %v1071, %v1070
    %v1159 = vpack.c.b16 %v1073, %v1072
    %v1160 = vpack.c.b16 %v1075, %v1074
    %v1161 = vpack.c.b16 %v1077, %v1076
    %v1162 = vpack.c.b16 %v1079, %v1078
    %v1163 = vpack.c.b16 %v1081, %v1080
    %v1164 = vpack.c.b16 %v1083, %v1082
    %v1165 = vpack.c.b16 %v1085, %v1084
    %v1166 = vpack.c.b16 %v1087, %v1086
    %v1167 = vpack.c.b16 %v1089, %v1088
    %v1168 = vpack.c.b16 %v1091, %v1090
    %v1169 = vpack.c.b16 %v1093, %v1092
    %v1170 = vpack.c.b16 %v1095, %v1094
    %v1171 = vpack.c.b16 %v1097, %v1096
    %v1172 = vpack.c.b16 %v1099, %v1098
    %v1173 = vpack.c.b16 %v1101, %v1100
    %v1174 = vpack.c.b16 %v1103, %v1102
    %v1175 = vpack.c.b16 %v1105, %v1104
    %v1176 = vpack.c.b16 %v1107, %v1106
    %v1177 = vpack.c.b16 %v1109, %v1108
    %v1178 = vpack.c.b16 %v1111, %v1110
    %v1179 = vpack.c.b16 %v1113, %v1112
    %v1180 = vpack.c.b16 %v1115, %v1114
    %v1181 = vpack.c.b16 %v1117, %v1116
    %1246 = vmatprep.subr.bf16.mxu0 0
    %1247 = vmatpush1.bf16.msra.mxu0 %v1125
    %1248 = vmatprep.subr.bf16.mxu0 0
    %1249 = vmatpush1.bf16.msra.mxu0 %v1124
    %1250 = vmatprep.subr.bf16.mxu0 0
    %1251 = vmatpush1.bf16.msra.mxu0 %v1123
    %1252 = vmatprep.subr.bf16.mxu0 0
    %1253 = vmatpush1.bf16.msra.mxu0 %v1122
    %1254 = vmatprep.subr.bf16.mxu0 0
    %1255 = vmatpush1.bf16.msra.mxu0 %v1121
    %1256 = vmatprep.subr.bf16.mxu0 0
    %1257 = vmatpush1.bf16.msra.mxu0 %v1120
    %1258 = vmatprep.subr.bf16.mxu0 0
    %1259 = vmatpush1.bf16.msra.mxu0 %v1119
    %1260 = vmatprep.subr.bf16.mxu0 0
    %1261 = vmatpush1.bf16.msra.mxu0 %v1118
    %1262 = vmatprep.subr.bf16.mxu0 0
    %1263 = vmatpush2.bf16.msra.mxu0 %v1133
    %1264 = vmatprep.subr.bf16.mxu0 0
    %1265 = vmatpush2.bf16.msra.mxu0 %v1132
    %1266 = vmatprep.subr.bf16.mxu0 0
    %1267 = vmatpush2.bf16.msra.mxu0 %v1131
    %1268 = vmatprep.subr.bf16.mxu0 0
    %1269 = vmatpush2.bf16.msra.mxu0 %v1130
    %1270 = vmatprep.subr.bf16.mxu0 0
    %1271 = vmatpush2.bf16.msra.mxu0 %v1129
    %1272 = vmatprep.subr.bf16.mxu0 0
    %1273 = vmatpush2.bf16.msra.mxu0 %v1128
    %1274 = vmatprep.subr.bf16.mxu0 0
    %1275 = vmatpush2.bf16.msra.mxu0 %v1127
    %1276 = vmatprep.subr.bf16.mxu0 0
    %1277 = vmatpush2.bf16.msra.mxu0 %v1126
    %1278 = vmatprep.mubr.bf16.mxu0 %v735
    %1279 = vmatmul.mubr.bf16.gmra.mxu0 %v734
    %v1280 = vpop.f32.mrf.mxu0
    %v1281 = vadd.f32 %v465, %v1280
    %v1282 = vpop.f32.mrf.mxu0
    %v1283 = vpop.f32.mrf.mxu0
    %v1284 = vadd.f32 %v470, %v1283
    %v1285 = vpop.f32.mrf.mxu0
    %1286 = vmatprep.mubr.bf16.mxu0 %v743
    %1287 = vmatmul.mubr.bf16.gmra.mxu0 %v742
    %v1288 = vpop.f32.mrf.mxu0
    %v1289 = vadd.f32 %v475, %v1288
    %v1290 = vpop.f32.mrf.mxu0
    %v1291 = vpop.f32.mrf.mxu0
    %v1292 = vadd.f32 %v480, %v1291
    %v1293 = vpop.f32.mrf.mxu0
    %1294 = vmatprep.mubr.bf16.mxu0 %v751
    %1295 = vmatmul.mubr.bf16.gmra.mxu0 %v750
    %v1296 = vpop.f32.mrf.mxu0
    %v1297 = vadd.f32 %v485, %v1296
    %v1298 = vpop.f32.mrf.mxu0
    %v1299 = vpop.f32.mrf.mxu0
    %v1300 = vadd.f32 %v490, %v1299
    %v1301 = vpop.f32.mrf.mxu0
    %1302 = vmatprep.mubr.bf16.mxu0 %v759
    %1303 = vmatmul.mubr.bf16.gmra.mxu0 %v758
    %v1304 = vpop.f32.mrf.mxu0
    %v1305 = vadd.f32 %v495, %v1304
    %v1306 = vpop.f32.mrf.mxu0
    %v1307 = vpop.f32.mrf.mxu0
    %v1308 = vadd.f32 %v500, %v1307
    %v1309 = vpop.f32.mrf.mxu0
    %1310 = vmatprep.mubr.bf16.mxu0 %v767
    %1311 = vmatmul.mubr.bf16.gmra.mxu0 %v766
    %v1312 = vpop.f32.mrf.mxu0
    %v1313 = vadd.f32 %v505, %v1312
    %v1314 = vpop.f32.mrf.mxu0
    %v1315 = vpop.f32.mrf.mxu0
    %v1316 = vadd.f32 %v510, %v1315
    %v1317 = vpop.f32.mrf.mxu0
    %1318 = vmatprep.mubr.bf16.mxu0 %v775
    %1319 = vmatmul.mubr.bf16.gmra.mxu0 %v774
    %v1320 = vpop.f32.mrf.mxu0
    %v1321 = vadd.f32 %v515, %v1320
    %v1322 = vpop.f32.mrf.mxu0
    %v1323 = vpop.f32.mrf.mxu0
    %v1324 = vadd.f32 %v520, %v1323
    %v1325 = vpop.f32.mrf.mxu0
    %1326 = vmatprep.mubr.bf16.mxu0 %v783
    %1327 = vmatmul.mubr.bf16.gmra.mxu0 %v782
    %v1328 = vpop.f32.mrf.mxu0
    %v1329 = vadd.f32 %v525, %v1328
    %v1330 = vpop.f32.mrf.mxu0
    %v1331 = vpop.f32.mrf.mxu0
    %v1332 = vadd.f32 %v530, %v1331
    %v1333 = vpop.f32.mrf.mxu0
    %1334 = vmatprep.mubr.bf16.mxu0 %v791
    %1335 = vmatmul.mubr.bf16.gmra.mxu0 %v790
    %v1336 = vpop.f32.mrf.mxu0
    %v1337 = vadd.f32 %v535, %v1336
    %v1338 = vpop.f32.mrf.mxu0
    %v1339 = vpop.f32.mrf.mxu0
    %v1340 = vadd.f32 %v540, %v1339
    %v1341 = vpop.f32.mrf.mxu0
    %1342 = vdwg.mxu0
    %1343 = vmatprep.subr.bf16.mxu0 0
    %1344 = vmatpush1.bf16.msra.mxu0 %v1141
    %1345 = vmatprep.subr.bf16.mxu0 0
    %1346 = vmatpush1.bf16.msra.mxu0 %v1140
    %1347 = vmatprep.subr.bf16.mxu0 0
    %1348 = vmatpush1.bf16.msra.mxu0 %v1139
    %1349 = vmatprep.subr.bf16.mxu0 0
    %1350 = vmatpush1.bf16.msra.mxu0 %v1138
    %1351 = vmatprep.subr.bf16.mxu0 0
    %1352 = vmatpush1.bf16.msra.mxu0 %v1137
    %1353 = vmatprep.subr.bf16.mxu0 0
    %1354 = vmatpush1.bf16.msra.mxu0 %v1136
    %1355 = vmatprep.subr.bf16.mxu0 0
    %1356 = vmatpush1.bf16.msra.mxu0 %v1135
    %1357 = vmatprep.subr.bf16.mxu0 0
    %1358 = vmatpush1.bf16.msra.mxu0 %v1134
    %1359 = vmatprep.subr.bf16.mxu0 0
    %1360 = vmatpush2.bf16.msra.mxu0 %v1149
    %1361 = vmatprep.subr.bf16.mxu0 0
    %1362 = vmatpush2.bf16.msra.mxu0 %v1148
    %1363 = vmatprep.subr.bf16.mxu0 0
    %1364 = vmatpush2.bf16.msra.mxu0 %v1147
    %1365 = vmatprep.subr.bf16.mxu0 0
    %1366 = vmatpush2.bf16.msra.mxu0 %v1146
    %1367 = vmatprep.subr.bf16.mxu0 0
    %1368 = vmatpush2.bf16.msra.mxu0 %v1145
    %1369 = vmatprep.subr.bf16.mxu0 0
    %1370 = vmatpush2.bf16.msra.mxu0 %v1144
    %1371 = vmatprep.subr.bf16.mxu0 0
    %1372 = vmatpush2.bf16.msra.mxu0 %v1143
    %1373 = vmatprep.subr.bf16.mxu0 0
    %1374 = vmatpush2.bf16.msra.mxu0 %v1142
    %1375 = vmatprep.mubr.bf16.mxu0 %v737
    %1376 = vmatmul.mubr.bf16.gmra.mxu0 %v736
    %v1377 = vpop.f32.mrf.mxu0
    %v1378 = vadd.f32 %v1281, %v1377
    %v1379 = vpop.f32.mrf.mxu0
    %v1380 = vpop.f32.mrf.mxu0
    %v1381 = vadd.f32 %v1284, %v1380
    %v1382 = vpop.f32.mrf.mxu0
    %1383 = vmatprep.mubr.bf16.mxu0 %v745
    %1384 = vmatmul.mubr.bf16.gmra.mxu0 %v744
    %v1385 = vpop.f32.mrf.mxu0
    %v1386 = vadd.f32 %v1289, %v1385
    %v1387 = vpop.f32.mrf.mxu0
    %v1388 = vpop.f32.mrf.mxu0
    %v1389 = vadd.f32 %v1292, %v1388
    %v1390 = vpop.f32.mrf.mxu0
    %1391 = vmatprep.mubr.bf16.mxu0 %v753
    %1392 = vmatmul.mubr.bf16.gmra.mxu0 %v752
    %v1393 = vpop.f32.mrf.mxu0
    %v1394 = vadd.f32 %v1297, %v1393
    %v1395 = vpop.f32.mrf.mxu0
    %v1396 = vpop.f32.mrf.mxu0
    %v1397 = vadd.f32 %v1300, %v1396
    %v1398 = vpop.f32.mrf.mxu0
    %1399 = vmatprep.mubr.bf16.mxu0 %v761
    %1400 = vmatmul.mubr.bf16.gmra.mxu0 %v760
    %v1401 = vpop.f32.mrf.mxu0
    %v1402 = vadd.f32 %v1305, %v1401
    %v1403 = vpop.f32.mrf.mxu0
    %v1404 = vpop.f32.mrf.mxu0
    %v1405 = vadd.f32 %v1308, %v1404
    %v1406 = vpop.f32.mrf.mxu0
    %1407 = vmatprep.mubr.bf16.mxu0 %v769
    %1408 = vmatmul.mubr.bf16.gmra.mxu0 %v768
    %v1409 = vpop.f32.mrf.mxu0
    %v1410 = vadd.f32 %v1313, %v1409
    %v1411 = vpop.f32.mrf.mxu0
    %v1412 = vpop.f32.mrf.mxu0
    %v1413 = vadd.f32 %v1316, %v1412
    %v1414 = vpop.f32.mrf.mxu0
    %1415 = vmatprep.mubr.bf16.mxu0 %v777
    %1416 = vmatmul.mubr.bf16.gmra.mxu0 %v776
    %v1417 = vpop.f32.mrf.mxu0
    %v1418 = vadd.f32 %v1321, %v1417
    %v1419 = vpop.f32.mrf.mxu0
    %v1420 = vpop.f32.mrf.mxu0
    %v1421 = vadd.f32 %v1324, %v1420
    %v1422 = vpop.f32.mrf.mxu0
    %1423 = vmatprep.mubr.bf16.mxu0 %v785
    %1424 = vmatmul.mubr.bf16.gmra.mxu0 %v784
    %v1425 = vpop.f32.mrf.mxu0
    %v1426 = vadd.f32 %v1329, %v1425
    %v1427 = vpop.f32.mrf.mxu0
    %v1428 = vpop.f32.mrf.mxu0
    %v1429 = vadd.f32 %v1332, %v1428
    %v1430 = vpop.f32.mrf.mxu0
    %1431 = vmatprep.mubr.bf16.mxu0 %v793
    %1432 = vmatmul.mubr.bf16.gmra.mxu0 %v792
    %v1433 = vpop.f32.mrf.mxu0
    %v1434 = vadd.f32 %v1337, %v1433
    %v1435 = vpop.f32.mrf.mxu0
    %v1436 = vpop.f32.mrf.mxu0
    %v1437 = vadd.f32 %v1340, %v1436
    %v1438 = vpop.f32.mrf.mxu0
    %1439 = vdwg.mxu0
    %1440 = vmatprep.subr.bf16.mxu0 0
    %1441 = vmatpush1.bf16.msra.mxu0 %v1157
    %1442 = vmatprep.subr.bf16.mxu0 0
    %1443 = vmatpush1.bf16.msra.mxu0 %v1156
    %1444 = vmatprep.subr.bf16.mxu0 0
    %1445 = vmatpush1.bf16.msra.mxu0 %v1155
    %1446 = vmatprep.subr.bf16.mxu0 0
    %1447 = vmatpush1.bf16.msra.mxu0 %v1154
    %1448 = vmatprep.subr.bf16.mxu0 0
    %1449 = vmatpush1.bf16.msra.mxu0 %v1153
    %1450 = vmatprep.subr.bf16.mxu0 0
    %1451 = vmatpush1.bf16.msra.mxu0 %v1152
    %1452 = vmatprep.subr.bf16.mxu0 0
    %1453 = vmatpush1.bf16.msra.mxu0 %v1151
    %1454 = vmatprep.subr.bf16.mxu0 0
    %1455 = vmatpush1.bf16.msra.mxu0 %v1150
    %1456 = vmatprep.subr.bf16.mxu0 0
    %1457 = vmatpush2.bf16.msra.mxu0 %v1165
    %1458 = vmatprep.subr.bf16.mxu0 0
    %1459 = vmatpush2.bf16.msra.mxu0 %v1164
    %1460 = vmatprep.subr.bf16.mxu0 0
    %1461 = vmatpush2.bf16.msra.mxu0 %v1163
    %1462 = vmatprep.subr.bf16.mxu0 0
    %1463 = vmatpush2.bf16.msra.mxu0 %v1162
    %1464 = vmatprep.subr.bf16.mxu0 0
    %1465 = vmatpush2.bf16.msra.mxu0 %v1161
    %1466 = vmatprep.subr.bf16.mxu0 0
    %1467 = vmatpush2.bf16.msra.mxu0 %v1160
    %1468 = vmatprep.subr.bf16.mxu0 0
    %1469 = vmatpush2.bf16.msra.mxu0 %v1159
    %1470 = vmatprep.subr.bf16.mxu0 0
    %1471 = vmatpush2.bf16.msra.mxu0 %v1158
    %1472 = vmatprep.mubr.bf16.mxu0 %v739
    %1473 = vmatmul.mubr.bf16.gmra.mxu0 %v738
    %v1474 = vpop.f32.mrf.mxu0
    %v1475 = vadd.f32 %v1378, %v1474
    %v1476 = vpop.f32.mrf.mxu0
    %v1477 = vpop.f32.mrf.mxu0
    %v1478 = vadd.f32 %v1381, %v1477
    %v1479 = vpop.f32.mrf.mxu0
    %1480 = vmatprep.mubr.bf16.mxu0 %v747
    %1481 = vmatmul.mubr.bf16.gmra.mxu0 %v746
    %v1482 = vpop.f32.mrf.mxu0
    %v1483 = vadd.f32 %v1386, %v1482
    %v1484 = vpop.f32.mrf.mxu0
    %v1485 = vpop.f32.mrf.mxu0
    %v1486 = vadd.f32 %v1389, %v1485
    %v1487 = vpop.f32.mrf.mxu0
    %1488 = vmatprep.mubr.bf16.mxu0 %v755
    %1489 = vmatmul.mubr.bf16.gmra.mxu0 %v754
    %v1490 = vpop.f32.mrf.mxu0
    %v1491 = vadd.f32 %v1394, %v1490
    %v1492 = vpop.f32.mrf.mxu0
    %v1493 = vpop.f32.mrf.mxu0
    %v1494 = vadd.f32 %v1397, %v1493
    %v1495 = vpop.f32.mrf.mxu0
    %1496 = vmatprep.mubr.bf16.mxu0 %v763
    %1497 = vmatmul.mubr.bf16.gmra.mxu0 %v762
    %v1498 = vpop.f32.mrf.mxu0
    %v1499 = vadd.f32 %v1402, %v1498
    %v1500 = vpop.f32.mrf.mxu0
    %v1501 = vpop.f32.mrf.mxu0
    %v1502 = vadd.f32 %v1405, %v1501
    %v1503 = vpop.f32.mrf.mxu0
    %1504 = vmatprep.mubr.bf16.mxu0 %v771
    %1505 = vmatmul.mubr.bf16.gmra.mxu0 %v770
    %v1506 = vpop.f32.mrf.mxu0
    %v1507 = vadd.f32 %v1410, %v1506
    %v1508 = vpop.f32.mrf.mxu0
    %v1509 = vpop.f32.mrf.mxu0
    %v1510 = vadd.f32 %v1413, %v1509
    %v1511 = vpop.f32.mrf.mxu0
    %1512 = vmatprep.mubr.bf16.mxu0 %v779
    %1513 = vmatmul.mubr.bf16.gmra.mxu0 %v778
    %v1514 = vpop.f32.mrf.mxu0
    %v1515 = vadd.f32 %v1418, %v1514
    %v1516 = vpop.f32.mrf.mxu0
    %v1517 = vpop.f32.mrf.mxu0
    %v1518 = vadd.f32 %v1421, %v1517
    %v1519 = vpop.f32.mrf.mxu0
    %1520 = vmatprep.mubr.bf16.mxu0 %v787
    %1521 = vmatmul.mubr.bf16.gmra.mxu0 %v786
    %v1522 = vpop.f32.mrf.mxu0
    %v1523 = vadd.f32 %v1426, %v1522
    %v1524 = vpop.f32.mrf.mxu0
    %v1525 = vpop.f32.mrf.mxu0
    %v1526 = vadd.f32 %v1429, %v1525
    %v1527 = vpop.f32.mrf.mxu0
    %1528 = vmatprep.mubr.bf16.mxu0 %v795
    %1529 = vmatmul.mubr.bf16.gmra.mxu0 %v794
    %v1530 = vpop.f32.mrf.mxu0
    %v1531 = vadd.f32 %v1434, %v1530
    %v1532 = vpop.f32.mrf.mxu0
    %v1533 = vpop.f32.mrf.mxu0
    %v1534 = vadd.f32 %v1437, %v1533
    %v1535 = vpop.f32.mrf.mxu0
    %1536 = vdwg.mxu0
    %1537 = vmatprep.subr.bf16.mxu0 0
    %1538 = vmatpush1.bf16.msra.mxu0 %v1173
    %1539 = vmatprep.subr.bf16.mxu0 0
    %1540 = vmatpush1.bf16.msra.mxu0 %v1172
    %1541 = vmatprep.subr.bf16.mxu0 0
    %1542 = vmatpush1.bf16.msra.mxu0 %v1171
    %1543 = vmatprep.subr.bf16.mxu0 0
    %1544 = vmatpush1.bf16.msra.mxu0 %v1170
    %1545 = vmatprep.subr.bf16.mxu0 0
    %1546 = vmatpush1.bf16.msra.mxu0 %v1169
    %1547 = vmatprep.subr.bf16.mxu0 0
    %1548 = vmatpush1.bf16.msra.mxu0 %v1168
    %1549 = vmatprep.subr.bf16.mxu0 0
    %1550 = vmatpush1.bf16.msra.mxu0 %v1167
    %1551 = vmatprep.subr.bf16.mxu0 0
    %1552 = vmatpush1.bf16.msra.mxu0 %v1166
    %1553 = vmatprep.subr.bf16.mxu0 0
    %1554 = vmatpush2.bf16.msra.mxu0 %v1181
    %1555 = vmatprep.subr.bf16.mxu0 0
    %1556 = vmatpush2.bf16.msra.mxu0 %v1180
    %1557 = vmatprep.subr.bf16.mxu0 0
    %1558 = vmatpush2.bf16.msra.mxu0 %v1179
    %1559 = vmatprep.subr.bf16.mxu0 0
    %1560 = vmatpush2.bf16.msra.mxu0 %v1178
    %1561 = vmatprep.subr.bf16.mxu0 0
    %1562 = vmatpush2.bf16.msra.mxu0 %v1177
    %1563 = vmatprep.subr.bf16.mxu0 0
    %1564 = vmatpush2.bf16.msra.mxu0 %v1176
    %1565 = vmatprep.subr.bf16.mxu0 0
    %1566 = vmatpush2.bf16.msra.mxu0 %v1175
    %1567 = vmatprep.subr.bf16.mxu0 0
    %1568 = vmatpush2.bf16.msra.mxu0 %v1174
    %1569 = vmatprep.mubr.bf16.mxu0 %v741
    %1570 = vmatmul.mubr.bf16.gmra.mxu0 %v740
    %v1571 = vpop.f32.mrf.mxu0
    %v1572 = vadd.f32 %v1475, %v1571
    %v1573 = vpop.f32.mrf.mxu0
    %v1574 = vpop.f32.mrf.mxu0
    %v1575 = vadd.f32 %v1478, %v1574
    %v1576 = vpop.f32.mrf.mxu0
    %1577 = vmatprep.mubr.bf16.mxu0 %v749
    %1578 = vmatmul.mubr.bf16.gmra.mxu0 %v748
    %v1579 = vpop.f32.mrf.mxu0
    %v1580 = vadd.f32 %v1483, %v1579
    %v1581 = vpop.f32.mrf.mxu0
    %v1582 = vpop.f32.mrf.mxu0
    %v1583 = vadd.f32 %v1486, %v1582
    %v1584 = vpop.f32.mrf.mxu0
    %1585 = vmatprep.mubr.bf16.mxu0 %v757
    %1586 = vmatmul.mubr.bf16.gmra.mxu0 %v756
    %v1587 = vpop.f32.mrf.mxu0
    %v1588 = vadd.f32 %v1491, %v1587
    %v1589 = vpop.f32.mrf.mxu0
    %v1590 = vpop.f32.mrf.mxu0
    %v1591 = vadd.f32 %v1494, %v1590
    %v1592 = vpop.f32.mrf.mxu0
    %1593 = vmatprep.mubr.bf16.mxu0 %v765
    %1594 = vmatmul.mubr.bf16.gmra.mxu0 %v764
    %v1595 = vpop.f32.mrf.mxu0
    %v1596 = vadd.f32 %v1499, %v1595
    %v1597 = vpop.f32.mrf.mxu0
    %v1598 = vpop.f32.mrf.mxu0
    %v1599 = vadd.f32 %v1502, %v1598
    %v1600 = vpop.f32.mrf.mxu0
    %1601 = vmatprep.mubr.bf16.mxu0 %v773
    %1602 = vmatmul.mubr.bf16.gmra.mxu0 %v772
    %v1603 = vpop.f32.mrf.mxu0
    %v1604 = vadd.f32 %v1507, %v1603
    %v1605 = vpop.f32.mrf.mxu0
    %v1606 = vpop.f32.mrf.mxu0
    %v1607 = vadd.f32 %v1510, %v1606
    %v1608 = vpop.f32.mrf.mxu0
    %1609 = vmatprep.mubr.bf16.mxu0 %v781
    %1610 = vmatmul.mubr.bf16.gmra.mxu0 %v780
    %v1611 = vpop.f32.mrf.mxu0
    %v1612 = vadd.f32 %v1515, %v1611
    %v1613 = vpop.f32.mrf.mxu0
    %v1614 = vpop.f32.mrf.mxu0
    %v1615 = vadd.f32 %v1518, %v1614
    %v1616 = vpop.f32.mrf.mxu0
    %1617 = vmatprep.mubr.bf16.mxu0 %v789
    %1618 = vmatmul.mubr.bf16.gmra.mxu0 %v788
    %v1619 = vpop.f32.mrf.mxu0
    %v1620 = vadd.f32 %v1523, %v1619
    %v1621 = vpop.f32.mrf.mxu0
    %v1622 = vpop.f32.mrf.mxu0
    %v1623 = vadd.f32 %v1526, %v1622
    %v1624 = vpop.f32.mrf.mxu0
    %1625 = vmatprep.mubr.bf16.mxu0 %v797
    %1626 = vmatmul.mubr.bf16.gmra.mxu0 %v796
    %v1627 = vpop.f32.mrf.mxu0
    %v1628 = vadd.f32 %v1531, %v1627
    %v1629 = vpop.f32.mrf.mxu0
    %v1630 = vpop.f32.mrf.mxu0
    %v1631 = vadd.f32 %v1534, %v1630
    %v1632 = vpop.f32.mrf.mxu0
    %1633 = vdwg.mxu0
    %1634 = vst [vmem:[%s7] sm:$0xff] %v1572
    %1635 = vst [vmem:[%s7 + $0x8] sm:$0xff] %v1575
    %1636 = vst [vmem:[%s7 + $0x10] sm:$0xff] %v1580
    %1637 = vst [vmem:[%s7 + $0x18] sm:$0xff] %v1583
    %1638 = vst [vmem:[%s7 + $0x20] sm:$0xff] %v1588
    %1639 = vst [vmem:[%s7 + $0x28] sm:$0xff] %v1591
    %1640 = vst [vmem:[%s7 + $0x30] sm:$0xff] %v1596
    %1641 = vst [vmem:[%s7 + $0x38] sm:$0xff] %v1599
    %1642 = vst [vmem:[%s7 + $0x40] sm:$0xff] %v1604
    %1643 = vst [vmem:[%s7 + $0x48] sm:$0xff] %v1607
    %1644 = vst [vmem:[%s7 + $0x50] sm:$0xff] %v1612
    %1645 = vst [vmem:[%s7 + $0x58] sm:$0xff] %v1615
    %1646 = vst [vmem:[%s7 + $0x60] sm:$0xff] %v1620
    %1647 = vst [vmem:[%s7 + $0x68] sm:$0xff] %v1623
    %1648 = vst [vmem:[%s7 + $0x70] sm:$0xff] %v1628
    %1649 = vst [vmem:[%s7 + $0x78] sm:$0xff] %v1631
    %v1650 = vld [vmem:[%s1] sm:$0xff]
    %v1651 = vld [vmem:[%s1 + $0x8] sm:$0xff]
    %v1652 = vld [vmem:[%s1 + $0x10] sm:$0xff]
    %v1653 = vld [vmem:[%s1 + $0x18] sm:$0xff]
    %vm1658 = vcmask 1046528
    %v1659 = vrot.slane %v1650, 1
    %v1660 = vrot.slane %v1651, 1
    %v1661 = vsel %vm1658, %v1659, %v1660
    %v1662 = vrot.slane %v1652, 1
    %v1663 = vsel %vm1658, %v1660, %v1662
    %v1664 = vrot.slane %v1653, 1
    %v1665 = vsel %vm1658, %v1662, %v1664
    %v1670 = vsel %vm1658, %v1664, %v1653
    %v1671 = vsub.f32 %v1661, %v1650
    %v1672 = vsub.f32 %v1663, %v1651
    %v1673 = vsub.f32 %v1665, %v1652
    %v1674 = vsub.f32 %v1670, %v1653
    %v1679 = vrot.slane %v1572, 1
    %v1680 = vrot.slane %v1575, 1
    %v1681 = vsel %vm1658, %v1679, %v1680
    %v1682 = vrot.slane %v1580, 1
    %v1683 = vsel %vm1658, %v1680, %v1682
    %v1684 = vrot.slane %v1583, 1
    %v1685 = vsel %vm1658, %v1682, %v1684
    %v1690 = vsel %vm1658, %v1684, %v1583
    %v1691 = vadd.f32 %v1572, %v1681
    %v1692 = vadd.f32 %v1575, %v1683
    %v1693 = vadd.f32 %v1580, %v1685
    %v1694 = vadd.f32 %v1583, %v1690
    %v1695 = vmul.f32 %v1691, 0.5
    %v1696 = vmul.f32 %v1692, 0.5
    %v1697 = vmul.f32 %v1693, 0.5
    %v1698 = vmul.f32 %v1694, 0.5
    %v1699 = vsub.f32 %v1695, 1.0
    %v1700 = vsub.f32 %v1696, 1.0
    %v1701 = vsub.f32 %v1697, 1.0
    %v1702 = vsub.f32 %v1698, 1.0
    %v1703 = vmax.f32 %v1699, 0.0
    %v1704 = vmax.f32 %v1700, 0.0
    %v1705 = vmax.f32 %v1701, 0.0
    %v1706 = vmax.f32 %v1702, 0.0
    %v1707 = vand.u32 2147483647, %v1699
    %v1708 = vand.u32 2147483647, %v1700
    %v1709 = vand.u32 2147483647, %v1701
    %v1710 = vand.u32 2147483647, %v1702
    %v1711 = vsub.f32 0.0, %v1707
    %v1712 = vsub.f32 0.0, %v1708
    %v1713 = vsub.f32 0.0, %v1709
    %v1714 = vsub.f32 0.0, %v1710
    %v1715 = vmul.f32 %v1711, 1.442695
    %v1716 = vpow.pop %v1715
    %v1717 = vmul.f32 %v1712, 1.442695
    %v1718 = vpow.pop %v1717
    %v1719 = vmul.f32 %v1713, 1.442695
    %v1720 = vpow.pop %v1719
    %v1721 = vmul.f32 %v1714, 1.442695
    %v1722 = vpow.pop %v1721
    %v1723 = vadd.f32 %v1716, 1.0
    %v1724 = vadd.f32 %v1718, 1.0
    %v1725 = vadd.f32 %v1720, 1.0
    %v1726 = vadd.f32 %v1722, 1.0
    %v1727 = vlog2.pop %v1723
    %v1728 = vmul.f32 %v1727, 0.6931472
    %v1729 = vlog2.pop %v1724
    %v1730 = vmul.f32 %v1729, 0.6931472
    %v1731 = vlog2.pop %v1725
    %v1732 = vmul.f32 %v1731, 0.6931472
    %v1733 = vlog2.pop %v1726
    %v1734 = vmul.f32 %v1733, 0.6931472
    %v1735 = vadd.f32 %v1703, %v1728
    %v1736 = vadd.f32 %v1704, %v1730
    %v1737 = vadd.f32 %v1705, %v1732
    %v1738 = vadd.f32 %v1706, %v1734
    %v1739 = vmul.f32 %v1735, %v1671
    %v1740 = vmul.f32 %v1736, %v1672
    %v1741 = vmul.f32 %v1737, %v1673
    %v1742 = vmul.f32 %v1738, %v1674
    %v1743 = vsub.f32 0.0, %v1739
    %v1744 = vsub.f32 0.0, %v1740
    %v1745 = vsub.f32 0.0, %v1741
    %v1746 = vsub.f32 0.0, %v1742
    %v1747 = vmul.f32 %v1743, 1.442695
    %v1748 = vpow.pop %v1747
    %v1749 = vmul.f32 %v1744, 1.442695
    %v1750 = vpow.pop %v1749
    %v1751 = vmul.f32 %v1745, 1.442695
    %v1752 = vpow.pop %v1751
    %v1753 = vmul.f32 %v1746, 1.442695
    %v1754 = vpow.pop %v1753
    %v1755 = vsub.f32 1.0, %v1748
    %v1756 = vsub.f32 1.0, %v1750
    %v1757 = vsub.f32 1.0, %v1752
    %v1758 = vsub.f32 1.0, %v1754
    %v1759 = vmax.f32 %v1743, -23.02585
    %v1760 = vmax.f32 %v1744, -23.02585
    %v1761 = vmax.f32 %v1745, -23.02585
    %v1762 = vmax.f32 %v1746, -23.02585
    %vm1767 = vcmask 1040384
    %v1768 = vrot.slane %v1759, 7
    %v1769 = vrot.slane %v1760, 7
    %v1770 = vsel %vm1767, %v1768, %v1769
    %v1771 = vrot.slane %v1761, 7
    %v1772 = vsel %vm1767, %v1769, %v1771
    %v1773 = vrot.slane %v1762, 7
    %v1774 = vsel %vm1767, %v1771, %v1773
    %v1779 = vsel %vm1767, 0.0, %v1768
    %v1780 = vadd.f32 %v1759, %v1779
    %v1781 = vadd.f32 %v1760, %v1770
    %v1782 = vadd.f32 %v1761, %v1772
    %v1783 = vadd.f32 %v1762, %v1774
    %vm1788 = vcmask 1041408
    %v1789 = vrot.slane %v1780, 6
    %v1790 = vrot.slane %v1781, 6
    %v1791 = vsel %vm1788, %v1789, %v1790
    %v1792 = vrot.slane %v1782, 6
    %v1793 = vsel %vm1788, %v1790, %v1792
    %v1794 = vrot.slane %v1783, 6
    %v1795 = vsel %vm1788, %v1792, %v1794
    %v1800 = vsel %vm1788, 0.0, %v1789
    %v1801 = vadd.f32 %v1780, %v1800
    %v1802 = vadd.f32 %v1781, %v1791
    %v1803 = vadd.f32 %v1782, %v1793
    %v1804 = vadd.f32 %v1783, %v1795
    %vm1809 = vcmask 1043456
    %v1810 = vrot.slane %v1801, 4
    %v1811 = vrot.slane %v1802, 4
    %v1812 = vsel %vm1809, %v1810, %v1811
    %v1813 = vrot.slane %v1803, 4
    %v1814 = vsel %vm1809, %v1811, %v1813
    %v1815 = vrot.slane %v1804, 4
    %v1816 = vsel %vm1809, %v1813, %v1815
    %v1821 = vsel %vm1809, 0.0, %v1810
    %v1822 = vadd.f32 %v1801, %v1821
    %v1823 = vadd.f32 %v1802, %v1812
    %v1824 = vadd.f32 %v1803, %v1814
    %v1825 = vadd.f32 %v1804, %v1816
    %v1826 = vadd.f32 %v1822, 0.0
    %v1827 = vadd.f32 %v1823, %v1822
    %v1828 = vadd.f32 %v1824, %v1823
    %v1829 = vadd.f32 %v1825, %v1824
    %v1830 = vadd.f32 %v1826, 0.0
    %v1831 = vadd.f32 %v1827, 0.0
    %v1832 = vadd.f32 %v1828, %v1826
    %v1833 = vadd.f32 %v1829, %v1827
    %v1838 = vrot.slane %v1830, 7
    %v1839 = vrot.slane %v1831, 7
    %v1840 = vsel %vm1767, %v1838, %v1839
    %v1841 = vrot.slane %v1832, 7
    %v1842 = vsel %vm1767, %v1839, %v1841
    %v1843 = vrot.slane %v1833, 7
    %v1844 = vsel %vm1767, %v1841, %v1843
    %v1849 = vsel %vm1767, 0.0, %v1838
    %v1850 = vmul.f32 %v1849, 1.442695
    %v1851 = vpow.pop %v1850
    %v1852 = vmul.f32 %v1840, 1.442695
    %v1853 = vpow.pop %v1852
    %v1854 = vmul.f32 %v1842, 1.442695
    %v1855 = vpow.pop %v1854
    %v1856 = vmul.f32 %v1844, 1.442695
    %v1857 = vpow.pop %v1856
    %v1858 = vmul.f32 %v1755, %v1851
    %v1859 = vmul.f32 %v1756, %v1853
    %v1860 = vmul.f32 %v1757, %v1855
    %v1861 = vmul.f32 %v1758, %v1857
    %1862 = vst [vmem:[%s8] sm:$0xff] %v1858
    %1863 = vst [vmem:[%s8 + $0x8] sm:$0xff] %v1859
    %1864 = vst [vmem:[%s8 + $0x10] sm:$0xff] %v1860
    %1865 = vst [vmem:[%s8 + $0x18] sm:$0xff] %v1861
    %v1870 = vrot.slane %v1858, 7
    %v1871 = vrot.slane %v1859, 7
    %v1872 = vsel %vm1767, %v1870, %v1871
    %v1873 = vrot.slane %v1860, 7
    %v1874 = vsel %vm1767, %v1871, %v1873
    %v1875 = vrot.slane %v1861, 7
    %v1876 = vsel %vm1767, %v1873, %v1875
    %v1881 = vsel %vm1767, 0.0, %v1870
    %v1882 = vadd.f32 %v1858, %v1881
    %v1883 = vadd.f32 %v1859, %v1872
    %v1884 = vadd.f32 %v1860, %v1874
    %v1885 = vadd.f32 %v1861, %v1876
    %v1886 = vmul.f32 %v1882, 0.5
    %v1887 = vmul.f32 %v1883, 0.5
    %v1888 = vmul.f32 %v1884, 0.5
    %v1889 = vmul.f32 %v1885, 0.5
    %v1890 = vadd.f32 %v1858, %v1859
    %v1891 = vadd.f32 %v1890, %v1860
    %v1892 = vadd.f32 %v1891, %v1861
    %v1893 = vrot.slane %v1892, 4
    %v1894 = vadd.f32 %v1892, %v1893
    %v1895 = vrot.slane %v1894, 2
    %v1896 = vadd.f32 %v1894, %v1895
    %v1897 = vrot.slane %v1896, 1
    %v1898 = vadd.f32 %v1896, %v1897
    %v1899 = vmul.f32 %v1886, %v1588
    %v1900 = vmul.f32 %v1887, %v1591
    %v1901 = vmul.f32 %v1888, %v1596
    %v1902 = vmul.f32 %v1889, %v1599
    %v1903 = vadd.f32 %v1899, %v1900
    %v1904 = vadd.f32 %v1903, %v1901
    %v1905 = vadd.f32 %v1904, %v1902
    %v1906 = vrot.slane %v1905, 4
    %v1907 = vadd.f32 %v1905, %v1906
    %v1908 = vrot.slane %v1907, 2
    %v1909 = vadd.f32 %v1907, %v1908
    %v1910 = vrot.slane %v1909, 1
    %v1911 = vadd.f32 %v1909, %v1910
    %v1912 = vmul.f32 %v1886, %v1604
    %v1913 = vmul.f32 %v1887, %v1607
    %v1914 = vmul.f32 %v1888, %v1612
    %v1915 = vmul.f32 %v1889, %v1615
    %v1916 = vadd.f32 %v1912, %v1913
    %v1917 = vadd.f32 %v1916, %v1914
    %v1918 = vadd.f32 %v1917, %v1915
    %v1919 = vrot.slane %v1918, 4
    %v1920 = vadd.f32 %v1918, %v1919
    %v1921 = vrot.slane %v1920, 2
    %v1922 = vadd.f32 %v1920, %v1921
    %v1923 = vrot.slane %v1922, 1
    %v1924 = vadd.f32 %v1922, %v1923
    %v1925 = vmul.f32 %v1886, %v1620
    %v1926 = vmul.f32 %v1887, %v1623
    %v1927 = vmul.f32 %v1888, %v1628
    %v1928 = vmul.f32 %v1889, %v1631
    %v1929 = vadd.f32 %v1925, %v1926
    %v1930 = vadd.f32 %v1929, %v1927
    %v1931 = vadd.f32 %v1930, %v1928
    %v1932 = vrot.slane %v1931, 4
    %v1933 = vadd.f32 %v1931, %v1932
    %v1934 = vrot.slane %v1933, 2
    %v1935 = vadd.f32 %v1933, %v1934
    %v1936 = vrot.slane %v1935, 1
    %v1937 = vadd.f32 %v1935, %v1936
    %v1938 = vmul.f32 %v1886, %v1650
    %v1939 = vmul.f32 %v1887, %v1651
    %v1940 = vmul.f32 %v1888, %v1652
    %v1941 = vmul.f32 %v1889, %v1653
    %v1942 = vadd.f32 %v1938, %v1939
    %v1943 = vadd.f32 %v1942, %v1940
    %v1944 = vadd.f32 %v1943, %v1941
    %v1945 = vrot.slane %v1944, 4
    %v1946 = vadd.f32 %v1944, %v1945
    %v1947 = vrot.slane %v1946, 2
    %v1948 = vadd.f32 %v1946, %v1947
    %v1949 = vrot.slane %v1948, 1
    %v1950 = vadd.f32 %v1948, %v1949
    %v1951 = vrcp.pop %v1898
    %v1952 = vmul.f32 %v1950, %v1951
    %vm1953 = vcmp.ne.f32.partialorder %v1952, %v1952
    %v1954 = vsel %vm1953, inf, %v1952
    %s1955 = sld [smem:[#allocation3]]
    %v1956 = vstv %s1955
    %v1957 = vmax.f32 %v1954, %v1956
    %s1958 = sld [smem:[#allocation3 + $0x1]]
    %v1959 = vstv %s1958
    %v1960 = vmin.f32 %v1957, %v1959
    %v1961 = vsel %vm1767, %v1911, %v1924
    %v1962 = vsel %vm1788, %v1961, %v1937
    %v1963 = vmul.f32 %v1962, 2.0
    %v1964 = vsub.f32 %v1963, 1.0
    %vm1965 = vcmask 1042432
    %v1966 = vsel %vm1965, %v1964, %v1960
    %1967 = vst [vmem:[%s9] sm:$0xf] %v1966
    // Predicated region
    $region41: #{_lambda_.1} parent=1 // pred_check
      _
    $region42: #{_lambda_.1} parent=1 // pred_check_branch
      %1969 = sbr.rel (0) target = $region44
    $region43: #{_lambda_.1} parent=1 // pred_region
      _
    $region44: #{_lambda_.1} parent=1 // pred_fallthru
      _
    // Predicated region
    $region45: #{_lambda_.1} parent=1 // pred_check
      _
    $region46: #{_lambda_.1} parent=1 // pred_check_branch
      %1971 = sbr.rel (0) target = $region48
    $region47: #{_lambda_.1} parent=1 // pred_region
      _
    $region48: #{_lambda_.1} parent=1 // pred_fallthru
      _
    // Predicated region
    $region49: #{_lambda_.1} parent=1 // pred_check
      _
    $region50: #{_lambda_.1} parent=1 // pred_check_branch
      %1973 = sbr.rel (0) target = $region52
    $region51: #{_lambda_.1} parent=1 // pred_region
      _
    $region52: #{_lambda_.1} parent=1 // pred_fallthru
      _
    // Predicated region
    $region53: #{_lambda_.1} parent=1 // pred_check
      _
    $region54: #{_lambda_.1} parent=1 // pred_check_branch
      %1975 = sbr.rel (0) target = $region56
    $region55: #{_lambda_.1} parent=1 // pred_region
      _
    $region56: #{_lambda_.1} parent=1 // pred_fallthru
      _
    // Predicated region
    $region57: #{_lambda_.1} parent=1 // pred_check
      _
    $region58: #{_lambda_.1} parent=1 // pred_check_branch
      %1977 = sbr.rel (0) target = $region60
    $region59: #{_lambda_.1} parent=1 // pred_region
      _
    $region60: #{_lambda_.1} parent=1 // pred_fallthru
      _
    // Predicated region
    $region61: #{_lambda_.1} parent=1 // pred_check
      _
    $region62: #{_lambda_.1} parent=1 // pred_check_branch
      %1979 = sbr.rel (0) target = $region64
    $region63: #{_lambda_.1} parent=1 // pred_region
      _
    $region64: #{_lambda_.1} parent=1 // pred_fallthru
      _
    %1980 = vsyncpa [#allocation4], 1

</llo_original>
